<compile_context>
chip_gen: v6e
topology: v6e:2x2x1
jax: 0.10.0
libtpu: 0.0.40
codegen_flags: <defaults>
</compile_context>

<pallas_src>
import jax
import jax.numpy as jnp
from jax.experimental import pallas as pl
from jax.experimental.pallas import tpu as pltpu

LANES = 128                    # all output-channel dims padded to this (lane-dense)
K1_PAD = 128                   # conv1 im2col K: 5*5*1  = 25  -> 128
K2_PAD = 256                   # conv2 im2col K: 5*5*6  = 150 -> 256
K_FC = 512                     # fc input       5*5*16  = 400 -> 512
_BF16 = jnp.bfloat16


def _round_up(x, m):
    return ((x + m - 1) // m) * m


def _pick_tile(m, cap, mult=16):
    """Row-tile size: >=2 grid steps when m allows (v7x shards the 'parallel'
    axis over its 2 TensorCores), otherwise as large as the cap (v5e/v6e
    prefer fewer, bigger steps; per-step overhead ~0.35us)."""
    half = _round_up(max(pl.cdiv(m, 2), mult), mult)
    return int(min(cap, half))


def _tile_vmem_bytes(shape, itemsize):
    """VMEM footprint of one buffer of `shape`: last dim padded to 128 lanes,
    second-to-last padded to the sublane tile (8 for 32-bit, 16 for 16-bit)."""
    sub_tile = 8 * max(1, 4 // itemsize)
    lanes = _round_up(int(shape[-1]), LANES)
    subs = _round_up(int(shape[-2]) if len(shape) >= 2 else 1, sub_tile)
    lead = 1
    for d in shape[:-2]:
        lead *= int(d)
    return lead * subs * lanes * itemsize


def _vmem_limit(*blocks):
    """blocks = (shape, itemsize) per pallas buffer.  2x for double-buffering,
    plus headroom; capped so the request is valid on v5e/v6e/v7x."""
    need = 2 * sum(_tile_vmem_bytes(s, i) for s, i in blocks) + (4 << 20)
    return int(min(max(need, 8 << 20), 32 << 20))


# --------------------------------------------------------------------------
# Kernel 1: fused conv (im2col matmul) + folded-BN bias + ReLU + 2x2 max-pool
# --------------------------------------------------------------------------
def _conv_bn_relu_pool_kernel(x_ref, w_ref, b_ref, o_ref):
    # x_ref: [TM, 4*Kp] bf16 -- one row per pooled output position; the 4
    #        members of its 2x2 pool window are concatenated along K, each
    #        zero-padded to Kp (a 128-lane multiple).
    # w_ref: [Kp, 128] bf16 (BN scale pre-folded), b_ref: [1, 128] f32.
    # o_ref: [TM, 128] bf16.
    kp = w_ref.shape[0]
    tm = o_ref.shape[0]
    x = x_ref[...]
    # Static lane-tile-aligned slices -> one concatenated LHS -> ONE matmul
    # (single weight push / continuous LHS stream through the MXU).
    lhs = jnp.concatenate([x[:, t * kp:(t + 1) * kp] for t in range(4)], axis=0)
    acc = jnp.dot(lhs, w_ref[...], preferred_element_type=jnp.float32)  # [4*TM, 128]
    # 2x2 max-pool == max over the 4 window members; commutes with the shared
    # per-channel bias add and the monotone ReLU.
    pooled = jnp.maximum(jnp.maximum(acc[0 * tm:1 * tm], acc[1 * tm:2 * tm]),
                         jnp.maximum(acc[2 * tm:3 * tm], acc[3 * tm:4 * tm]))
    o_ref[...] = jnp.maximum(pooled + b_ref[...], 0.0).astype(o_ref.dtype)


def conv_bn_relu_pool(patches, w, b, *, tile_cap=512):
    """patches: [M, 4*Kp] bf16, w: [Kp, 128] bf16, b: [1, 128] f32 -> [M, 128] bf16."""
    M, K4 = patches.shape
    kp, N = w.shape
    assert K4 == 4 * kp
    tm = _pick_tile(M, tile_cap)
    Mp = _round_up(M, tm)
    if Mp != M:
        patches = jnp.pad(patches, ((0, Mp - M), (0, 0)))
    vmem = _vmem_limit(((tm, K4), 2), ((kp, N), 2), ((1, N), 4), ((tm, N), 2))
    out = pl.pallas_call(
        _conv_bn_relu_pool_kernel,
        out_shape=jax.ShapeDtypeStruct((Mp, N), _BF16),
        grid_spec=pltpu.PrefetchScalarGridSpec(
            num_scalar_prefetch=0,
            grid=(Mp // tm,),
            in_specs=[
                pl.BlockSpec((tm, K4), lambda i: (i, 0)),   # one contiguous DMA / step
                pl.BlockSpec((kp, N), lambda i: (0, 0)),    # resident weights
                pl.BlockSpec((1, N), lambda i: (0, 0)),     # resident bias
            ],
            out_specs=pl.BlockSpec((tm, N), lambda i: (i, 0)),
        ),
        compiler_params=pltpu.CompilerParams(
            dimension_semantics=("parallel",),
            vmem_limit_bytes=vmem,
        ),
    )(patches, w, b)
    return out[:M] if Mp != M else out


# --------------------------------------------------------------------------
# Kernel 2: fused FC stack 512(=400 padded) -> 120 -> 84 -> num_classes
# --------------------------------------------------------------------------
def _fc_stack_kernel(x_ref, w1_ref, b1_ref, w2_ref, b2_ref, w3_ref, b3_ref, o_ref):
    h = jnp.dot(x_ref[...], w1_ref[...], preferred_element_type=jnp.float32)
    h = jnp.maximum(h + b1_ref[...], 0.0)
    h = jnp.dot(h.astype(_BF16), w2_ref[...], preferred_element_type=jnp.float32)
    h = jnp.maximum(h + b2_ref[...], 0.0)
    h = jnp.dot(h.astype(_BF16), w3_ref[...], preferred_element_type=jnp.float32)
    o_ref[...] = h + b3_ref[...]


def fc_stack(x, w1, b1, w2, b2, w3, b3, *, tile_cap=512):
    """x: [B, 512] bf16; weights bf16 / biases f32, all padded to 128 lanes."""
    B, K = x.shape
    tb = _pick_tile(B, tile_cap)
    Bp = _round_up(B, tb)
    if Bp != B:
        x = jnp.pad(x, ((0, Bp - B), (0, 0)))
    const = lambda a: pl.BlockSpec(tuple(a.shape), lambda i: (0, 0))
    blocks = [((tb, K), 2), ((tb, LANES), 4)] + [
        (tuple(a.shape), a.dtype.itemsize) for a in (w1, b1, w2, b2, w3, b3)]
    vmem = _vmem_limit(*blocks)
    out = pl.pallas_call(
        _fc_stack_kernel,
        out_shape=jax.ShapeDtypeStruct((Bp, LANES), jnp.float32),
        grid_spec=pltpu.PrefetchScalarGridSpec(
            num_scalar_prefetch=0,
            grid=(Bp // tb,),
            in_specs=[
                pl.BlockSpec((tb, K), lambda i: (i, 0)),
                const(w1), const(b1), const(w2), const(b2), const(w3), const(b3),
            ],
            out_specs=pl.BlockSpec((tb, LANES), lambda i: (i, 0)),
        ),
        compiler_params=pltpu.CompilerParams(
            dimension_semantics=("parallel",),
            vmem_limit_bytes=vmem,
        ),
    )(x, w1, b1, w2, b2, w3, b3)
    return out[:B] if Bp != B else out


# --------------------------------------------------------------------------
# Glue: im2col (pooled-position-major rows), BN folding, weight padding
# --------------------------------------------------------------------------
def im2col_pool(x, k, kp):
    """x: [B, H, W, C] (NHWC) -> [B*(OH//2)*(OW//2), 4*kp].

    Each row is one pooled output position (b, ph, pw); the columns hold the 4
    members (wy, wx) of its 2x2 pool window, each an im2col patch in
    (ky, kx, c) order zero-padded to kp (matching fold_conv_bn's layout).
    """
    B, H, W, C = x.shape
    OH, OW = H - k + 1, W - k + 1
    PH, PW = OH // 2, OW // 2
    kkc = k * k * C
    assert kp >= kkc and kp % LANES == 0
    pats = [x[:, dy:dy + OH, dx:dx + OW, :] for dy in range(k) for dx in range(k)]
    p = jnp.stack(pats, axis=3)                      # [B, OH, OW, k*k, C]
    p = p.reshape(B, PH, 2, PW, 2, kkc)
    p = p.transpose(0, 1, 3, 2, 4, 5)                # [B, PH, PW, wy, wx, kkc]
    p = jnp.pad(p, ((0, 0),) * 5 + ((0, kp - kkc),))
    return p.reshape(B * PH * PW, 4 * kp)


def fold_conv_bn(w, conv_b, gamma, beta, mean, var, kp, eps=1e-5):
    """Fold conv bias + eval-mode BN into (weight, bias); pad K to kp and
    out-channels to 128 lanes."""
    oc, c, k, _ = w.shape
    s = gamma / jnp.sqrt(var + eps)
    wm = w.transpose(2, 3, 1, 0).reshape(k * k * c, oc) * s[None, :]   # scale folded
    bm = (conv_b - mean) * s + beta
    wm = jnp.pad(wm, ((0, kp - k * k * c), (0, LANES - oc)))
    bm = jnp.pad(bm, (0, LANES - oc)).reshape(1, LANES)
    return wm.astype(_BF16), bm.astype(jnp.float32)


def prep_fc_first(fc_w, fc_b):
    """fc_w: [120, 400] over a (16,5,5) NCHW flatten -> [K_FC, 128] matching the
    compacted (position-major, channel-minor) conv2 output layout."""
    out_d = fc_w.shape[0]
    w = fc_w.reshape(out_d, 16, 5, 5).transpose(0, 2, 3, 1).reshape(out_d, 400)
    w = jnp.pad(w.T, ((0, K_FC - 400), (0, LANES - out_d)))     # [512, 128]
    b = jnp.pad(fc_b, (0, LANES - out_d)).reshape(1, LANES)
    return w.astype(_BF16), b.astype(jnp.float32)


def prep_fc(w, b):
    """w: [out, in] -> [128, 128] (zero-padded), b -> [1, 128]."""
    out_d, in_d = w.shape
    wm = jnp.pad(w.T, ((0, LANES - in_d), (0, LANES - out_d)))
    bm = jnp.pad(b, (0, LANES - out_d)).reshape(1, LANES)
    return wm.astype(_BF16), bm.astype(jnp.float32)


def init_params(key, num_classes):
    ks = jax.random.split(key, 12)
    f32 = jnp.float32
    return {
        "conv1_w": 0.1 * jax.random.normal(ks[0], (6, 1, 5, 5), f32),
        "conv1_b": 0.1 * jax.random.normal(ks[1], (6,), f32),
        "bn1_gamma": 1.0 + 0.1 * jax.random.normal(ks[2], (6,), f32),
        "bn1_beta": 0.1 * jax.random.normal(ks[3], (6,), f32),
        "bn1_mean": jnp.zeros((6,), f32),
        "bn1_var": jnp.ones((6,), f32),
        "conv2_w": 0.1 * jax.random.normal(ks[4], (16, 6, 5, 5), f32),
        "conv2_b": 0.1 * jax.random.normal(ks[5], (16,), f32),
        "bn2_gamma": 1.0 + 0.1 * jax.random.normal(ks[6], (16,), f32),
        "bn2_beta": 0.1 * jax.random.normal(ks[7], (16,), f32),
        "bn2_mean": jnp.zeros((16,), f32),
        "bn2_var": jnp.ones((16,), f32),
        "fc_w": 0.05 * jax.random.normal(ks[8], (120, 400), f32),
        "fc_b": 0.05 * jax.random.normal(ks[9], (120,), f32),
        "fc1_w": 0.05 * jax.random.normal(ks[10], (84, 120), f32),
        "fc1_b": jnp.zeros((84,), f32),
        "fc2_w": 0.05 * jax.random.normal(ks[11], (num_classes, 84), f32),
        "fc2_b": jnp.zeros((num_classes,), f32),
    }


def lenet5_forward(x, params, num_classes):
    """x: [B, 1, 32, 32] float32 (NCHW) -> logits [B, num_classes]."""
    B = x.shape[0]

    # ---- layer1: Conv(1->6,5x5) + BN + ReLU + MaxPool(2), fully fused ----
    xin = x.transpose(0, 2, 3, 1).astype(_BF16)              # NHWC [B, 32, 32, 1]
    p1 = im2col_pool(xin, 5, K1_PAD)                         # [B*196, 512]
    w1, b1 = fold_conv_bn(params["conv1_w"], params["conv1_b"],
                          params["bn1_gamma"], params["bn1_beta"],
                          params["bn1_mean"], params["bn1_var"], K1_PAD)
    y1 = conv_bn_relu_pool(p1, w1, b1)                       # [B*196, 128] bf16

    # ---- layer2: Conv(6->16,5x5) + BN + ReLU + MaxPool(2), fully fused ----
    a1 = y1.reshape(B, 14, 14, LANES)[..., :6]               # NHWC [B, 14, 14, 6]
    p2 = im2col_pool(a1, 5, K2_PAD)                          # [B*25, 1024]
    w2, b2 = fold_conv_bn(params["conv2_w"], params["conv2_b"],
                          params["bn2_gamma"], params["bn2_beta"],
                          params["bn2_mean"], params["bn2_var"], K2_PAD)
    y2 = conv_bn_relu_pool(p2, w2, b2)                       # [B*25, 128] bf16

    # ---- fused FC stack; conv2 output compacted to its 16 real channels so
    #      FC1's K is 512 instead of a 87%-zero 3200 ----
    a2 = y2.reshape(B, 25, LANES)[:, :, :16].reshape(B, 400)
    flat = jnp.pad(a2, ((0, 0), (0, K_FC - 400)))            # [B, 512] bf16
    wf, bf = prep_fc_first(params["fc_w"], params["fc_b"])
    wf1, bf1 = prep_fc(params["fc1_w"], params["fc1_b"])
    wf2, bf2 = prep_fc(params["fc2_w"], params["fc2_b"])
    logits = fc_stack(flat, wf, bf, wf1, bf1, wf2, bf2)      # [B, 128] f32
    return logits[:, :num_classes]


# --------------------------------------------------------------------------
# Pure-JAX f32 reference (kernels use bf16 MXU operands with f32 accumulation)
# --------------------------------------------------------------------------
def lenet5_reference(x, params):
    def block(x, w, b, gamma, beta, mean, var):
        y = jax.lax.conv_general_dilated(
            x, w, window_strides=(1, 1), padding="VALID",
            dimension_numbers=("NCHW", "OIHW", "NCHW"))
        y = y + b.reshape(1, -1, 1, 1)
        s = (gamma / jnp.sqrt(var + 1e-5)).reshape(1, -1, 1, 1)
        y = (y - mean.reshape(1, -1, 1, 1)) * s + beta.reshape(1, -1, 1, 1)
        y = jnp.maximum(y, 0.0)
        return jax.lax.reduce_window(y, -jnp.inf, jax.lax.max,
                                     (1, 1, 2, 2), (1, 1, 2, 2), "VALID")
    y = block(x, params["conv1_w"], params["conv1_b"], params["bn1_gamma"],
              params["bn1_beta"], params["bn1_mean"], params["bn1_var"])
    y = block(y, params["conv2_w"], params["conv2_b"], params["bn2_gamma"],
              params["bn2_beta"], params["bn2_mean"], params["bn2_var"])
    y = y.reshape(y.shape[0], -1)
    y = jnp.maximum(y @ params["fc_w"].T + params["fc_b"], 0.0)
    y = jnp.maximum(y @ params["fc1_w"].T + params["fc1_b"], 0.0)
    return y @ params["fc2_w"].T + params["fc2_b"]


if __name__ == "__main__":
    num_classes = 10
    key = jax.random.PRNGKey(0)
    k_param, k_x = jax.random.split(key)
    params = init_params(k_param, num_classes)
    # LeNet-5 requires 32x32 input so that flatten = 16*5*5 = 400.
    x = jax.random.normal(k_x, (2, 1, 32, 32), jnp.float32)

    fwd = jax.jit(lambda xx: lenet5_forward(xx, params, num_classes))
    logits = jax.block_until_ready(fwd(x))

    assert logits.shape == (2, num_classes)
    assert bool(jnp.all(jnp.isfinite(logits)))

    ref = jax.jit(lambda xx: lenet5_reference(xx, params))(x)
    err = float(jnp.max(jnp.abs(logits - ref)) / (jnp.max(jnp.abs(ref)) + 1e-6))
    # Tightened from 0.1 -> 0.05 (bf16 operands on the MXU, f32 accumulation).
    assert err < 0.05, f"mismatch vs f32 reference (normalized max err {err:.4f})"
    print("KERNEL_OK")
</pallas_src>

<mosaic_0001>
module attributes {stable_mosaic.version = 11 : i64} {
  func.func @_conv_bn_relu_pool_kernel(%arg0: i32, %arg1: memref<208x512xbf16, #tpu.memory_space<vmem>>, %arg2: memref<128x128xbf16, #tpu.memory_space<vmem>>, %arg3: memref<1x128xf32, #tpu.memory_space<vmem>>, %arg4: memref<208x128xbf16, #tpu.memory_space<vmem>>) attributes {dimension_semantics = [#tpu.dimension_semantics<parallel>], iteration_bounds = array<i64: 2>, scalar_prefetch = 0 : i64, scratch_operands = 0 : i64, tpu.core_type = #tpu.core_type<tc>, window_params = [{transform_indices = @transform_0, window_bounds = array<i64: 208, 512>}, {pipeline_mode = #tpu.pipeline_mode<synchronous>, transform_indices = @transform_1, window_bounds = array<i64: 128, 128>}, {pipeline_mode = #tpu.pipeline_mode<synchronous>, transform_indices = @transform_2, window_bounds = array<i64: 1, 128>}, {transform_indices = @transform_3, window_bounds = array<i64: 208, 128>}]} {
    %c0 = arith.constant 0 : index
    %c0_0 = arith.constant 0 : index
    %0 = vector.load %arg1[%c0, %c0_0] : memref<208x512xbf16, #tpu.memory_space<vmem>>, vector<208x512xbf16>
    %1 = vector.extract_strided_slice %0 {offsets = [0, 0], sizes = [208, 128], strides = [1, 1]} : vector<208x512xbf16> to vector<208x128xbf16>
    %2 = vector.extract_strided_slice %0 {offsets = [0, 128], sizes = [208, 128], strides = [1, 1]} : vector<208x512xbf16> to vector<208x128xbf16>
    %3 = vector.extract_strided_slice %0 {offsets = [0, 256], sizes = [208, 128], strides = [1, 1]} : vector<208x512xbf16> to vector<208x128xbf16>
    %4 = vector.extract_strided_slice %0 {offsets = [0, 384], sizes = [208, 128], strides = [1, 1]} : vector<208x512xbf16> to vector<208x128xbf16>
    %5 = tpu.concatenate %1, %2, %3, %4 in 0 : vector<208x128xbf16>, vector<208x128xbf16>, vector<208x128xbf16>, vector<208x128xbf16> -> vector<832x128xbf16>
    %c0_1 = arith.constant 0 : index
    %c0_2 = arith.constant 0 : index
    %6 = vector.load %arg2[%c0_1, %c0_2] : memref<128x128xbf16, #tpu.memory_space<vmem>>, vector<128x128xbf16>
    %cst = arith.constant dense<0.000000e+00> : vector<832x128xf32>
    %7 = tpu.matmul %5, %6, %cst {dimension_numbers = #tpu.dot_dimension_numbers<[1], [0], [0], [1], [0, 0, 1, 1], [], []>} : vector<832x128xbf16>, vector<128x128xbf16>, vector<832x128xf32> -> vector<832x128xf32>
    %8 = vector.extract_strided_slice %7 {offsets = [0, 0], sizes = [208, 128], strides = [1, 1]} : vector<832x128xf32> to vector<208x128xf32>
    %9 = vector.extract_strided_slice %7 {offsets = [208, 0], sizes = [208, 128], strides = [1, 1]} : vector<832x128xf32> to vector<208x128xf32>
    %10 = arith.maximumf %8, %9 : vector<208x128xf32>
    %11 = vector.extract_strided_slice %7 {offsets = [416, 0], sizes = [208, 128], strides = [1, 1]} : vector<832x128xf32> to vector<208x128xf32>
    %12 = vector.extract_strided_slice %7 {offsets = [624, 0], sizes = [208, 128], strides = [1, 1]} : vector<832x128xf32> to vector<208x128xf32>
    %13 = arith.maximumf %11, %12 : vector<208x128xf32>
    %14 = arith.maximumf %10, %13 : vector<208x128xf32>
    %c0_3 = arith.constant 0 : index
    %c0_4 = arith.constant 0 : index
    %15 = vector.load %arg3[%c0_3, %c0_4] : memref<1x128xf32, #tpu.memory_space<vmem>>, vector<1x128xf32>
    %16 = vector.broadcast %15 : vector<1x128xf32> to vector<208x128xf32>
    %17 = arith.addf %14, %16 : vector<208x128xf32>
    %cst_5 = arith.constant 0.000000e+00 : f32
    %18 = vector.broadcast %cst_5 : f32 to vector<208x128xf32>
    %19 = arith.maximumf %17, %18 : vector<208x128xf32>
    %20 = arith.truncf %19 : vector<208x128xf32> to vector<208x128xbf16>
    %c0_6 = arith.constant 0 : index
    %c0_7 = arith.constant 0 : index
    %21 = vector.load %arg4[%c0_6, %c0_7] : memref<208x128xbf16, #tpu.memory_space<vmem>>, vector<208x128xbf16>
    tpu.vector_store %arg4[%c0_6, %c0_7], %20 {strides = array<i32>} : memref<208x128xbf16, #tpu.memory_space<vmem>>, vector<208x128xbf16>,
    return
  }
  func.func @transform_0(%arg0: i32) -> (i32, i32) {
    %c0_i32 = arith.constant 0 : i32
    %c0_i32_0 = arith.constant 0 : i32
    return %arg0, %c0_i32 : i32, i32
  }
  func.func @transform_1(%arg0: i32) -> (i32, i32) {
    %c0_i32 = arith.constant 0 : i32
    %c0_i32_0 = arith.constant 0 : i32
    %c0_i32_1 = arith.constant 0 : i32
    return %c0_i32, %c0_i32_0 : i32, i32
  }
  func.func @transform_2(%arg0: i32) -> (i32, i32) {
    %c0_i32 = arith.constant 0 : i32
    %c0_i32_0 = arith.constant 0 : i32
    %c0_i32_1 = arith.constant 0 : i32
    return %c0_i32, %c0_i32_0 : i32, i32
  }
  func.func @transform_3(%arg0: i32) -> (i32, i32) {
    %c0_i32 = arith.constant 0 : i32
    %c0_i32_0 = arith.constant 0 : i32
    return %arg0, %c0_i32 : i32, i32
  }
}

module attributes {stable_mosaic.version = 11 : i64} {
  func.func @_conv_bn_relu_pool_kernel(%arg0: i32, %arg1: memref<32x1024xbf16, #tpu.memory_space<vmem>>, %arg2: memref<256x128xbf16, #tpu.memory_space<vmem>>, %arg3: memref<1x128xf32, #tpu.memory_space<vmem>>, %arg4: memref<32x128xbf16, #tpu.memory_space<vmem>>) attributes {dimension_semantics = [#tpu.dimension_semantics<parallel>], iteration_bounds = array<i64: 2>, scalar_prefetch = 0 : i64, scratch_operands = 0 : i64, tpu.core_type = #tpu.core_type<tc>, window_params = [{transform_indices = @transform_0, window_bounds = array<i64: 32, 1024>}, {pipeline_mode = #tpu.pipeline_mode<synchronous>, transform_indices = @transform_1, window_bounds = array<i64: 256, 128>}, {pipeline_mode = #tpu.pipeline_mode<synchronous>, transform_indices = @transform_2, window_bounds = array<i64: 1, 128>}, {transform_indices = @transform_3, window_bounds = array<i64: 32, 128>}]} {
    %c0 = arith.constant 0 : index
    %c0_0 = arith.constant 0 : index
    %0 = vector.load %arg1[%c0, %c0_0] : memref<32x1024xbf16, #tpu.memory_space<vmem>>, vector<32x1024xbf16>
    %1 = vector.extract_strided_slice %0 {offsets = [0, 0], sizes = [32, 256], strides = [1, 1]} : vector<32x1024xbf16> to vector<32x256xbf16>
    %2 = vector.extract_strided_slice %0 {offsets = [0, 256], sizes = [32, 256], strides = [1, 1]} : vector<32x1024xbf16> to vector<32x256xbf16>
    %3 = vector.extract_strided_slice %0 {offsets = [0, 512], sizes = [32, 256], strides = [1, 1]} : vector<32x1024xbf16> to vector<32x256xbf16>
    %4 = vector.extract_strided_slice %0 {offsets = [0, 768], sizes = [32, 256], strides = [1, 1]} : vector<32x1024xbf16> to vector<32x256xbf16>
    %5 = tpu.concatenate %1, %2, %3, %4 in 0 : vector<32x256xbf16>, vector<32x256xbf16>, vector<32x256xbf16>, vector<32x256xbf16> -> vector<128x256xbf16>
    %c0_1 = arith.constant 0 : index
    %c0_2 = arith.constant 0 : index
    %6 = vector.load %arg2[%c0_1, %c0_2] : memref<256x128xbf16, #tpu.memory_space<vmem>>, vector<256x128xbf16>
    %cst = arith.constant dense<0.000000e+00> : vector<128x128xf32>
    %7 = tpu.matmul %5, %6, %cst {dimension_numbers = #tpu.dot_dimension_numbers<[1], [0], [0], [1], [0, 0, 1, 1], [], []>} : vector<128x256xbf16>, vector<256x128xbf16>, vector<128x128xf32> -> vector<128x128xf32>
    %8 = vector.extract_strided_slice %7 {offsets = [0, 0], sizes = [32, 128], strides = [1, 1]} : vector<128x128xf32> to vector<32x128xf32>
    %9 = vector.extract_strided_slice %7 {offsets = [32, 0], sizes = [32, 128], strides = [1, 1]} : vector<128x128xf32> to vector<32x128xf32>
    %10 = arith.maximumf %8, %9 : vector<32x128xf32>
    %11 = vector.extract_strided_slice %7 {offsets = [64, 0], sizes = [32, 128], strides = [1, 1]} : vector<128x128xf32> to vector<32x128xf32>
    %12 = vector.extract_strided_slice %7 {offsets = [96, 0], sizes = [32, 128], strides = [1, 1]} : vector<128x128xf32> to vector<32x128xf32>
    %13 = arith.maximumf %11, %12 : vector<32x128xf32>
    %14 = arith.maximumf %10, %13 : vector<32x128xf32>
    %c0_3 = arith.constant 0 : index
    %c0_4 = arith.constant 0 : index
    %15 = vector.load %arg3[%c0_3, %c0_4] : memref<1x128xf32, #tpu.memory_space<vmem>>, vector<1x128xf32>
    %16 = vector.broadcast %15 : vector<1x128xf32> to vector<32x128xf32>
    %17 = arith.addf %14, %16 : vector<32x128xf32>
    %cst_5 = arith.constant 0.000000e+00 : f32
    %18 = vector.broadcast %cst_5 : f32 to vector<32x128xf32>
    %19 = arith.maximumf %17, %18 : vector<32x128xf32>
    %20 = arith.truncf %19 : vector<32x128xf32> to vector<32x128xbf16>
    %c0_6 = arith.constant 0 : index
    %c0_7 = arith.constant 0 : index
    %21 = vector.load %arg4[%c0_6, %c0_7] : memref<32x128xbf16, #tpu.memory_space<vmem>>, vector<32x128xbf16>
    tpu.vector_store %arg4[%c0_6, %c0_7], %20 {strides = array<i32>} : memref<32x128xbf16, #tpu.memory_space<vmem>>, vector<32x128xbf16>,
    return
  }
  func.func @transform_0(%arg0: i32) -> (i32, i32) {
    %c0_i32 = arith.constant 0 : i32
    %c0_i32_0 = arith.constant 0 : i32
    return %arg0, %c0_i32 : i32, i32
  }
  func.func @transform_1(%arg0: i32) -> (i32, i32) {
    %c0_i32 = arith.constant 0 : i32
    %c0_i32_0 = arith.constant 0 : i32
    %c0_i32_1 = arith.constant 0 : i32
    return %c0_i32, %c0_i32_0 : i32, i32
  }
  func.func @transform_2(%arg0: i32) -> (i32, i32) {
    %c0_i32 = arith.constant 0 : i32
    %c0_i32_0 = arith.constant 0 : i32
    %c0_i32_1 = arith.constant 0 : i32
    return %c0_i32, %c0_i32_0 : i32, i32
  }
  func.func @transform_3(%arg0: i32) -> (i32, i32) {
    %c0_i32 = arith.constant 0 : i32
    %c0_i32_0 = arith.constant 0 : i32
    return %arg0, %c0_i32 : i32, i32
  }
}

module attributes {stable_mosaic.version = 11 : i64} {
  func.func @_fc_stack_kernel(%arg0: i32, %arg1: memref<16x512xbf16, #tpu.memory_space<vmem>>, %arg2: memref<512x128xbf16, #tpu.memory_space<vmem>>, %arg3: memref<1x128xf32, #tpu.memory_space<vmem>>, %arg4: memref<128x128xbf16, #tpu.memory_space<vmem>>, %arg5: memref<1x128xf32, #tpu.memory_space<vmem>>, %arg6: memref<128x128xbf16, #tpu.memory_space<vmem>>, %arg7: memref<1x128xf32, #tpu.memory_space<vmem>>, %arg8: memref<16x128xf32, #tpu.memory_space<vmem>>) attributes {dimension_semantics = [#tpu.dimension_semantics<parallel>], iteration_bounds = array<i64: 1>, scalar_prefetch = 0 : i64, scratch_operands = 0 : i64, tpu.core_type = #tpu.core_type<tc>, window_params = [{transform_indices = @transform_0, window_bounds = array<i64: 16, 512>}, {pipeline_mode = #tpu.pipeline_mode<synchronous>, transform_indices = @transform_1, window_bounds = array<i64: 512, 128>}, {pipeline_mode = #tpu.pipeline_mode<synchronous>, transform_indices = @transform_2, window_bounds = array<i64: 1, 128>}, {pipeline_mode = #tpu.pipeline_mode<synchronous>, transform_indices = @transform_3, window_bounds = array<i64: 128, 128>}, {pipeline_mode = #tpu.pipeline_mode<synchronous>, transform_indices = @transform_4, window_bounds = array<i64: 1, 128>}, {pipeline_mode = #tpu.pipeline_mode<synchronous>, transform_indices = @transform_5, window_bounds = array<i64: 128, 128>}, {pipeline_mode = #tpu.pipeline_mode<synchronous>, transform_indices = @transform_6, window_bounds = array<i64: 1, 128>}, {transform_indices = @transform_7, window_bounds = array<i64: 16, 128>}]} {
    %c0 = arith.constant 0 : index
    %c0_0 = arith.constant 0 : index
    %0 = vector.load %arg1[%c0, %c0_0] : memref<16x512xbf16, #tpu.memory_space<vmem>>, vector<16x512xbf16>
    %c0_1 = arith.constant 0 : index
    %c0_2 = arith.constant 0 : index
    %1 = vector.load %arg2[%c0_1, %c0_2] : memref<512x128xbf16, #tpu.memory_space<vmem>>, vector<512x128xbf16>
    %cst = arith.constant dense<0.000000e+00> : vector<16x128xf32>
    %2 = tpu.matmul %0, %1, %cst {dimension_numbers = #tpu.dot_dimension_numbers<[1], [0], [0], [1], [0, 0, 1, 1], [], []>} : vector<16x512xbf16>, vector<512x128xbf16>, vector<16x128xf32> -> vector<16x128xf32>
    %c0_3 = arith.constant 0 : index
    %c0_4 = arith.constant 0 : index
    %3 = vector.load %arg3[%c0_3, %c0_4] : memref<1x128xf32, #tpu.memory_space<vmem>>, vector<1x128xf32>
    %4 = vector.broadcast %3 : vector<1x128xf32> to vector<16x128xf32>
    %5 = arith.addf %2, %4 : vector<16x128xf32>
    %cst_5 = arith.constant 0.000000e+00 : f32
    %6 = vector.broadcast %cst_5 : f32 to vector<16x128xf32>
    %7 = arith.maximumf %5, %6 : vector<16x128xf32>
    %8 = arith.truncf %7 : vector<16x128xf32> to vector<16x128xbf16>
    %c0_6 = arith.constant 0 : index
    %c0_7 = arith.constant 0 : index
    %9 = vector.load %arg4[%c0_6, %c0_7] : memref<128x128xbf16, #tpu.memory_space<vmem>>, vector<128x128xbf16>
    %cst_8 = arith.constant dense<0.000000e+00> : vector<16x128xf32>
    %10 = tpu.matmul %8, %9, %cst_8 {dimension_numbers = #tpu.dot_dimension_numbers<[1], [0], [0], [1], [0, 0, 1, 1], [], []>} : vector<16x128xbf16>, vector<128x128xbf16>, vector<16x128xf32> -> vector<16x128xf32>
    %c0_9 = arith.constant 0 : index
    %c0_10 = arith.constant 0 : index
    %11 = vector.load %arg5[%c0_9, %c0_10] : memref<1x128xf32, #tpu.memory_space<vmem>>, vector<1x128xf32>
    %12 = vector.broadcast %11 : vector<1x128xf32> to vector<16x128xf32>
    %13 = arith.addf %10, %12 : vector<16x128xf32>
    %cst_11 = arith.constant 0.000000e+00 : f32
    %14 = vector.broadcast %cst_11 : f32 to vector<16x128xf32>
    %15 = arith.maximumf %13, %14 : vector<16x128xf32>
    %16 = arith.truncf %15 : vector<16x128xf32> to vector<16x128xbf16>
    %c0_12 = arith.constant 0 : index
    %c0_13 = arith.constant 0 : index
    %17 = vector.load %arg6[%c0_12, %c0_13] : memref<128x128xbf16, #tpu.memory_space<vmem>>, vector<128x128xbf16>
    %cst_14 = arith.constant dense<0.000000e+00> : vector<16x128xf32>
    %18 = tpu.matmul %16, %17, %cst_14 {dimension_numbers = #tpu.dot_dimension_numbers<[1], [0], [0], [1], [0, 0, 1, 1], [], []>} : vector<16x128xbf16>, vector<128x128xbf16>, vector<16x128xf32> -> vector<16x128xf32>
    %c0_15 = arith.constant 0 : index
    %c0_16 = arith.constant 0 : index
    %19 = vector.load %arg7[%c0_15, %c0_16] : memref<1x128xf32, #tpu.memory_space<vmem>>, vector<1x128xf32>
    %20 = vector.broadcast %19 : vector<1x128xf32> to vector<16x128xf32>
    %21 = arith.addf %18, %20 : vector<16x128xf32>
    %c0_17 = arith.constant 0 : index
    %c0_18 = arith.constant 0 : index
    %22 = vector.load %arg8[%c0_17, %c0_18] : memref<16x128xf32, #tpu.memory_space<vmem>>, vector<16x128xf32>
    tpu.vector_store %arg8[%c0_17, %c0_18], %21 {strides = array<i32>} : memref<16x128xf32, #tpu.memory_space<vmem>>, vector<16x128xf32>,
    return
  }
  func.func @transform_0(%arg0: i32) -> (i32, i32) {
    %c0_i32 = arith.constant 0 : i32
    %c0_i32_0 = arith.constant 0 : i32
    return %arg0, %c0_i32 : i32, i32
  }
  func.func @transform_1(%arg0: i32) -> (i32, i32) {
    %c0_i32 = arith.constant 0 : i32
    %c0_i32_0 = arith.constant 0 : i32
    %c0_i32_1 = arith.constant 0 : i32
    return %c0_i32, %c0_i32_0 : i32, i32
  }
  func.func @transform_2(%arg0: i32) -> (i32, i32) {
    %c0_i32 = arith.constant 0 : i32
    %c0_i32_0 = arith.constant 0 : i32
    %c0_i32_1 = arith.constant 0 : i32
    return %c0_i32, %c0_i32_0 : i32, i32
  }
  func.func @transform_3(%arg0: i32) -> (i32, i32) {
    %c0_i32 = arith.constant 0 : i32
    %c0_i32_0 = arith.constant 0 : i32
    %c0_i32_1 = arith.constant 0 : i32
    return %c0_i32, %c0_i32_0 : i32, i32
  }
  func.func @transform_4(%arg0: i32) -> (i32, i32) {
    %c0_i32 = arith.constant 0 : i32
    %c0_i32_0 = arith.constant 0 : i32
    %c0_i32_1 = arith.constant 0 : i32
    return %c0_i32, %c0_i32_0 : i32, i32
  }
  func.func @transform_5(%arg0: i32) -> (i32, i32) {
    %c0_i32 = arith.constant 0 : i32
    %c0_i32_0 = arith.constant 0 : i32
    %c0_i32_1 = arith.constant 0 : i32
    return %c0_i32, %c0_i32_0 : i32, i32
  }
  func.func @transform_6(%arg0: i32) -> (i32, i32) {
    %c0_i32 = arith.constant 0 : i32
    %c0_i32_0 = arith.constant 0 : i32
    %c0_i32_1 = arith.constant 0 : i32
    return %c0_i32, %c0_i32_0 : i32, i32
  }
  func.func @transform_7(%arg0: i32) -> (i32, i32) {
    %c0_i32 = arith.constant 0 : i32
    %c0_i32_0 = arith.constant 0 : i32
    return %arg0, %c0_i32 : i32, i32
  }
}

</mosaic_0001>

<llo_original>
// kernel: _lambda_.3
$region0: #{_lambda_.3}
  #allocation0 [shape = 'u32[]', space=smem, size = 0x4, offset = 0x4, fixed_abs, tag = 'smem constant byte address 0x4 - core index']
  #allocation1 [shape = 'u32[144,128]{1,0:T(1,128)}', space=vmem, size = 0x12000, scoped, tag = 'internal scratch']
  %s0 = inlined_call_operand.vmem [shape: bf16[416,512], index: 0, kind: input, shape index: {}]
  %s1 = inlined_call_operand.vmem [shape: bf16[128,128], index: 1, kind: input, shape index: {}]
  %s2 = inlined_call_operand.vmem [shape: f32[1,128], index: 2, kind: input, shape index: {}]
  %s3 = inlined_call_operand.vmem [shape: bf16[416,128], index: 3, kind: output, shape index: {}]
  %s4 = sld [smem:[#allocation0]]
  $region45: #{_lambda_.3} parent=0
    _
  %s6 = ssub.s32 1, %s4
  %s7 = scalar_select 0, %s6, %s4
  loop: start=0, step=1, limit=4
  $region2: #{_lambda_.3} parent=0 // loop_pre_header
    _
  $region3: #{_lambda_.3} parent=0 // loop_header
    %s9 = sphi 0, %s13
    %p10 = scmp.ge.s32.totalorder %s9, 4
    %s19 = sphi 0, %s21
    %s22 = sphi 0, %s19
    %s23 = sphi 0, %s22
    %s39 = sphi 0, %s23
    %s43 = sphi 0, %s43
    %s45 = sphi 0, %s43
    %s46 = sphi 0, %s45
    %s60 = sphi 0, %s46
    %s64 = sphi 0, %s64
    %s66 = sphi 0, %s64
    %s67 = sphi 0, %s66
    %s81 = sphi 0, %s67
    %s87 = sphi 0, %s89
    %s90 = sphi 0, %s87
    %s91 = sphi 0, %s90
    %s107 = sphi 0, %s91
  $region4: #{_lambda_.3} parent=0 // loop_header_branch
    %12 = sbr.rel (%p10) target = $region8
  $region5: #{_lambda_.3} parent=0 // loop_body
    %s14 = ssub.s32 %s9, 1
    %s15 = ssub.s32 %s9, 2
    %s16 = sadd.s32 %s9, 1
    %s17 = ssub.s32 %s9, %s16
    %p18 = scmp.eq.s32.totalorder %s17, 0
    %s20 = sadd.s32 %s19, 1
    %s21 = scalar_select %p18, %s19, %s20
    %p24 = pneg %p18
    %p25 = scmp.eq.s32.totalorder %s9, 1
    %p26 = por %p24, %p25
    %p27 = scmp.ne.s32.totalorder %s19, %s22
    %p28 = scmp.eq.s32.totalorder %s9, 0
    %p29 = por %p27, %p28
    %p30 = scmp.ne.s32.totalorder %s19, %s22
    %p31 = scmp.eq.s32.totalorder %s14, 1
    %p32 = por %p30, %p31
    %p33 = scmp.ne.s32.totalorder %s22, %s23
    %p34 = scmp.eq.s32.totalorder %s14, 0
    %p35 = por %p33, %p34
    %p36 = scmp.ne.s32.totalorder %s22, %s23
    %p37 = scmp.eq.s32.totalorder %s15, 1
    %p38 = por %p36, %p37
    %p40 = scmp.ne.s32.totalorder %s23, %s39
    %p41 = scmp.eq.s32.totalorder %s15, 0
    %p42 = por %p40, %p41
    %s44 = sadd.s32 %s43, 1
    %p47 = scmp.eq.s32.totalorder %s9, 1
    %p48 = scmp.ne.s32.totalorder %s43, %s45
    %p49 = scmp.eq.s32.totalorder %s9, 0
    %p50 = por %p48, %p49
    %p51 = scmp.ne.s32.totalorder %s43, %s45
    %p52 = scmp.eq.s32.totalorder %s14, 1
    %p53 = por %p51, %p52
    %p54 = scmp.ne.s32.totalorder %s45, %s46
    %p55 = scmp.eq.s32.totalorder %s14, 0
    %p56 = por %p54, %p55
    %p57 = scmp.ne.s32.totalorder %s45, %s46
    %p58 = scmp.eq.s32.totalorder %s15, 1
    %p59 = por %p57, %p58
    %p61 = scmp.ne.s32.totalorder %s46, %s60
    %p62 = scmp.eq.s32.totalorder %s15, 0
    %p63 = por %p61, %p62
    %s65 = sadd.s32 %s64, 1
    %p68 = scmp.eq.s32.totalorder %s9, 1
    %p69 = scmp.ne.s32.totalorder %s64, %s66
    %p70 = scmp.eq.s32.totalorder %s9, 0
    %p71 = por %p69, %p70
    %p72 = scmp.ne.s32.totalorder %s64, %s66
    %p73 = scmp.eq.s32.totalorder %s14, 1
    %p74 = por %p72, %p73
    %p75 = scmp.ne.s32.totalorder %s66, %s67
    %p76 = scmp.eq.s32.totalorder %s14, 0
    %p77 = por %p75, %p76
    %p78 = scmp.ne.s32.totalorder %s66, %s67
    %p79 = scmp.eq.s32.totalorder %s15, 1
    %p80 = por %p78, %p79
    %p82 = scmp.ne.s32.totalorder %s67, %s81
    %p83 = scmp.eq.s32.totalorder %s15, 0
    %p84 = por %p82, %p83
    %s85 = ssub.s32 %s9, %s16
    %p86 = scmp.eq.s32.totalorder %s85, 0
    %s88 = sadd.s32 %s87, 1
    %s89 = scalar_select %p86, %s87, %s88
    %p92 = pneg %p86
    %p93 = scmp.eq.s32.totalorder %s9, 1
    %p94 = por %p92, %p93
    %p95 = scmp.ne.s32.totalorder %s87, %s90
    %p96 = scmp.eq.s32.totalorder %s9, 0
    %p97 = por %p95, %p96
    %p98 = scmp.ne.s32.totalorder %s87, %s90
    %p99 = scmp.eq.s32.totalorder %s14, 1
    %p100 = por %p98, %p99
    %p101 = scmp.ne.s32.totalorder %s90, %s91
    %p102 = scmp.eq.s32.totalorder %s14, 0
    %p103 = por %p101, %p102
    %p104 = scmp.ne.s32.totalorder %s90, %s91
    %p105 = scmp.eq.s32.totalorder %s15, 1
    %p106 = por %p104, %p105
    %p108 = scmp.ne.s32.totalorder %s91, %s107
    %p109 = scmp.eq.s32.totalorder %s15, 0
    %p110 = por %p108, %p109
    %p111 = scmp.le.s32.totalorder 1, %s9
    %p112 = scmp.lt.s32.totalorder %s9, 3
    %p113 = pnand %p111, %p112
    %p114 = pneg %p113
    // Predicated region
    $region9: #{_lambda_.3} parent=5 // pred_check
      _
    $region10: #{_lambda_.3} parent=5 // pred_check_branch
      %116 = sbr.rel (%p113) target = $region12
    $region11: #{_lambda_.3} parent=5 // pred_region
      %s117 = ssub.s32 %s9, 1
      // Predicated region
      $region13: #{_lambda_.3} parent=11 // pred_check
        %p118 = pneg %p56
      $region14: #{_lambda_.3} parent=11 // pred_check_branch
        %120 = sbr.rel (%p118) target = $region16
      $region15: #{_lambda_.3} parent=11 // pred_region
        _
      $region16: #{_lambda_.3} parent=11 // pred_fallthru
        _
      // Predicated region
      $region17: #{_lambda_.3} parent=11 // pred_check
        %p121 = pneg %p77
      $region18: #{_lambda_.3} parent=11 // pred_check_branch
        %123 = sbr.rel (%p121) target = $region20
      $region19: #{_lambda_.3} parent=11 // pred_region
        _
      $region20: #{_lambda_.3} parent=11 // pred_fallthru
        _
    $region12: #{_lambda_.3} parent=5 // pred_fallthru
      _
    %p124 = scmp.lt.s32.totalorder %s9, 2
    // Predicated region
    $region21: #{_lambda_.3} parent=5 // pred_check
      %p125 = pneg %p124
    $region22: #{_lambda_.3} parent=5 // pred_check_branch
      %127 = sbr.rel (%p125) target = $region24
    $region23: #{_lambda_.3} parent=5 // pred_region
      // Predicated region
      $region25: #{_lambda_.3} parent=23 // pred_check
        %p128 = pneg %p29
      $region26: #{_lambda_.3} parent=23 // pred_check_branch
        %130 = sbr.rel (%p128) target = $region28
      $region27: #{_lambda_.3} parent=23 // pred_region
        %s131 = smul.u32 26, %s9
        %p132 = scmp.lt.s32.totalorder %s131, 51
        %s133 = scalar_select %p132, %s131, 51
        %s134 = smul.addr %s133, 4
        %s135 = smul.addr %s134, 4
        %s136 = scalar_lea.vmem %s0, %s135
        %s137 = smul.u32 26, %s9
      $region28: #{_lambda_.3} parent=23 // pred_fallthru
        _
    $region24: #{_lambda_.3} parent=5 // pred_fallthru
      _
    %p138 = scmp.le.s32.totalorder 1, %s9
    %p139 = scmp.lt.s32.totalorder %s9, 3
    %p140 = pnand %p138, %p139
    %p141 = pneg %p140
    // Predicated region
    $region29: #{_lambda_.3} parent=5 // pred_check
      _
    $region30: #{_lambda_.3} parent=5 // pred_check_branch
      %143 = sbr.rel (%p140) target = $region32
    $region31: #{_lambda_.3} parent=5 // pred_region
      %s144 = ssub.s32 %s9, 1
      %s145 = smul.u32 26, %s14
      %p146 = scmp.lt.s32.totalorder %s145, 51
      %s147 = scalar_select %p146, %s145, 51
      %s148 = smul.addr %s147, 4
      %s149 = smul.addr %s148, 4
      %s150 = scalar_lea.vmem %s0, %s149
      %p151 = pneg %p35
      %p152 = pneg %p32
      %p153 = pneg %p56
      %p154 = pneg %p53
      %p155 = pneg %p77
      %p156 = pneg %p74
      %p157 = pneg %p103
      %p158 = pneg %p100
      %s159 = smul.u32 26, %s14
      %p160 = scmp.lt.s32.totalorder %s159, 51
      %s161 = scalar_select %p160, %s159, 51
      %s162 = smul.addr %s161, 4
      %s163 = scalar_lea.vmem %s3, %s162
      %s164 = smul.u32 26, %s14
      %p165 = scmp.lt.s32.totalorder %s164, 51
      %s166 = scalar_select %p165, %s164, 51
      %s167 = smul.addr %s166, 4
      %s168 = smul.addr %s167, 4
      %s169 = scalar_lea.vmem %s0, %s168
      %s170 = smul.u32 26, %s14
      %s171 = smul.u32 26, %s14
      %p172 = scmp.lt.s32.totalorder %s171, 51
      %s173 = scalar_select %p172, %s171, 51
      %s174 = smul.addr %s173, 4
      %s175 = scalar_lea.vmem %s3, %s174
      %s176 = smul.u32 26, %s14
      %v178 = vld [vmem:[%s169] sm:$0xff]
      %v179 = vld [vmem:[%s169 + $0x8] sm:$0xff]
      %v180 = vld [vmem:[%s169 + $0x10] sm:$0xff]
      %v181 = vld [vmem:[%s169 + $0x18] sm:$0xff]
      %v182 = vld [vmem:[%s169 + $0x20] sm:$0xff]
      %v183 = vld [vmem:[%s169 + $0x28] sm:$0xff]
      %v184 = vld [vmem:[%s169 + $0x30] sm:$0xff]
      %v185 = vld [vmem:[%s169 + $0x38] sm:$0xff]
      %v186 = vld [vmem:[%s169 + $0x40] sm:$0xff]
      %v187 = vld [vmem:[%s169 + $0x48] sm:$0xff]
      %v188 = vld [vmem:[%s169 + $0x50] sm:$0xff]
      %v189 = vld [vmem:[%s169 + $0x58] sm:$0xff]
      %v190 = vld [vmem:[%s169 + $0x60] sm:$0xff]
      %v191 = vld [vmem:[%s169 + $0x68] sm:$0xff]
      %v192 = vld [vmem:[%s169 + $0x70] sm:$0xff]
      %v193 = vld [vmem:[%s169 + $0x78] sm:$0xff]
      %v194 = vld [vmem:[%s169 + $0x80] sm:$0xff]
      %v195 = vld [vmem:[%s169 + $0x88] sm:$0xff]
      %v196 = vld [vmem:[%s169 + $0x90] sm:$0xff]
      %v197 = vld [vmem:[%s169 + $0x98] sm:$0xff]
      %v198 = vld [vmem:[%s169 + $0xa0] sm:$0xff]
      %v199 = vld [vmem:[%s169 + $0xa8] sm:$0xff]
      %v200 = vld [vmem:[%s169 + $0xb0] sm:$0xff]
      %v201 = vld [vmem:[%s169 + $0xb8] sm:$0xff]
      %v202 = vld [vmem:[%s169 + $0xc0] sm:$0xff]
      %v203 = vld [vmem:[%s169 + $0xc8] sm:$0xff]
      %v204 = vld [vmem:[%s169 + $0xd0] sm:$0xff]
      %v205 = vld [vmem:[%s169 + $0xd8] sm:$0xff]
      %v206 = vld [vmem:[%s169 + $0xe0] sm:$0xff]
      %v207 = vld [vmem:[%s169 + $0xe8] sm:$0xff]
      %v208 = vld [vmem:[%s169 + $0xf0] sm:$0xff]
      %v209 = vld [vmem:[%s169 + $0xf8] sm:$0xff]
      %v210 = vld [vmem:[%s169 + $0x100] sm:$0xff]
      %v211 = vld [vmem:[%s169 + $0x108] sm:$0xff]
      %v212 = vld [vmem:[%s169 + $0x110] sm:$0xff]
      %v213 = vld [vmem:[%s169 + $0x118] sm:$0xff]
      %v214 = vld [vmem:[%s169 + $0x120] sm:$0xff]
      %v215 = vld [vmem:[%s169 + $0x128] sm:$0xff]
      %v216 = vld [vmem:[%s169 + $0x130] sm:$0xff]
      %v217 = vld [vmem:[%s169 + $0x138] sm:$0xff]
      %v218 = vld [vmem:[%s169 + $0x140] sm:$0xff]
      %v219 = vld [vmem:[%s169 + $0x148] sm:$0xff]
      %v220 = vld [vmem:[%s169 + $0x150] sm:$0xff]
      %v221 = vld [vmem:[%s169 + $0x158] sm:$0xff]
      %v222 = vld [vmem:[%s169 + $0x160] sm:$0xff]
      %v223 = vld [vmem:[%s169 + $0x168] sm:$0xff]
      %v224 = vld [vmem:[%s169 + $0x170] sm:$0xff]
      %v225 = vld [vmem:[%s169 + $0x178] sm:$0xff]
      %v226 = vld [vmem:[%s169 + $0x180] sm:$0xff]
      %v227 = vld [vmem:[%s169 + $0x188] sm:$0xff]
      %v228 = vld [vmem:[%s169 + $0x190] sm:$0xff]
      %v229 = vld [vmem:[%s169 + $0x198] sm:$0xff]
      %v256 = vunpack.c.l.b16 %v178
      %v257 = vunpack.c.l.b16 %v180
      %v258 = vunpack.c.l.b16 %v182
      %v259 = vunpack.c.l.b16 %v184
      %v260 = vunpack.c.l.b16 %v186
      %v261 = vunpack.c.l.b16 %v188
      %v262 = vunpack.c.l.b16 %v190
      %v263 = vunpack.c.l.b16 %v192
      %v264 = vunpack.c.l.b16 %v194
      %v265 = vunpack.c.l.b16 %v196
      %v266 = vunpack.c.l.b16 %v198
      %v267 = vunpack.c.l.b16 %v200
      %v268 = vunpack.c.l.b16 %v202
      %v269 = vunpack.c.l.b16 %v204
      %v270 = vunpack.c.l.b16 %v206
      %v271 = vunpack.c.l.b16 %v208
      %v272 = vunpack.c.l.b16 %v210
      %v273 = vunpack.c.l.b16 %v212
      %v274 = vunpack.c.l.b16 %v214
      %v275 = vunpack.c.l.b16 %v216
      %v276 = vunpack.c.l.b16 %v218
      %v277 = vunpack.c.l.b16 %v220
      %v278 = vunpack.c.l.b16 %v222
      %v279 = vunpack.c.l.b16 %v224
      %v280 = vunpack.c.l.b16 %v226
      %v281 = vunpack.c.l.b16 %v228
      %v282 = vpack.c.b16 %v257, %v256
      %v283 = vpack.c.b16 %v259, %v258
      %v284 = vpack.c.b16 %v261, %v260
      %v285 = vpack.c.b16 %v263, %v262
      %v286 = vpack.c.b16 %v265, %v264
      %v287 = vpack.c.b16 %v267, %v266
      %v288 = vpack.c.b16 %v269, %v268
      %v289 = vpack.c.b16 %v271, %v270
      %v290 = vpack.c.b16 %v273, %v272
      %v291 = vpack.c.b16 %v275, %v274
      %v292 = vpack.c.b16 %v277, %v276
      %v293 = vpack.c.b16 %v279, %v278
      %v294 = vpack.c.b16 %v281, %v280
      %v308 = vunpack.c.h.b16 %v178
      %v309 = vunpack.c.h.b16 %v180
      %v310 = vunpack.c.h.b16 %v182
      %v311 = vunpack.c.h.b16 %v184
      %v312 = vunpack.c.h.b16 %v186
      %v313 = vunpack.c.h.b16 %v188
      %v314 = vunpack.c.h.b16 %v190
      %v315 = vunpack.c.h.b16 %v192
      %v316 = vunpack.c.h.b16 %v194
      %v317 = vunpack.c.h.b16 %v196
      %v318 = vunpack.c.h.b16 %v198
      %v319 = vunpack.c.h.b16 %v200
      %v320 = vunpack.c.h.b16 %v202
      %v321 = vunpack.c.h.b16 %v204
      %v322 = vunpack.c.h.b16 %v206
      %v323 = vunpack.c.h.b16 %v208
      %v324 = vunpack.c.h.b16 %v210
      %v325 = vunpack.c.h.b16 %v212
      %v326 = vunpack.c.h.b16 %v214
      %v327 = vunpack.c.h.b16 %v216
      %v328 = vunpack.c.h.b16 %v218
      %v329 = vunpack.c.h.b16 %v220
      %v330 = vunpack.c.h.b16 %v222
      %v331 = vunpack.c.h.b16 %v224
      %v332 = vunpack.c.h.b16 %v226
      %v333 = vunpack.c.h.b16 %v228
      %v334 = vpack.c.b16 %v309, %v308
      %v335 = vpack.c.b16 %v311, %v310
      %v336 = vpack.c.b16 %v313, %v312
      %v337 = vpack.c.b16 %v315, %v314
      %v338 = vpack.c.b16 %v317, %v316
      %v339 = vpack.c.b16 %v319, %v318
      %v340 = vpack.c.b16 %v321, %v320
      %v341 = vpack.c.b16 %v323, %v322
      %v342 = vpack.c.b16 %v325, %v324
      %v343 = vpack.c.b16 %v327, %v326
      %v344 = vpack.c.b16 %v329, %v328
      %v345 = vpack.c.b16 %v331, %v330
      %v346 = vpack.c.b16 %v333, %v332
      %v386 = vunpack.c.l.b16 %v179
      %v387 = vunpack.c.l.b16 %v181
      %v388 = vunpack.c.l.b16 %v183
      %v389 = vunpack.c.l.b16 %v185
      %v390 = vunpack.c.l.b16 %v187
      %v391 = vunpack.c.l.b16 %v189
      %v392 = vunpack.c.l.b16 %v191
      %v393 = vunpack.c.l.b16 %v193
      %v394 = vunpack.c.l.b16 %v195
      %v395 = vunpack.c.l.b16 %v197
      %v396 = vunpack.c.l.b16 %v199
      %v397 = vunpack.c.l.b16 %v201
      %v398 = vunpack.c.l.b16 %v203
      %v399 = vunpack.c.l.b16 %v205
      %v400 = vunpack.c.l.b16 %v207
      %v401 = vunpack.c.l.b16 %v209
      %v402 = vunpack.c.l.b16 %v211
      %v403 = vunpack.c.l.b16 %v213
      %v404 = vunpack.c.l.b16 %v215
      %v405 = vunpack.c.l.b16 %v217
      %v406 = vunpack.c.l.b16 %v219
      %v407 = vunpack.c.l.b16 %v221
      %v408 = vunpack.c.l.b16 %v223
      %v409 = vunpack.c.l.b16 %v225
      %v410 = vunpack.c.l.b16 %v227
      %v411 = vunpack.c.l.b16 %v229
      %v412 = vpack.c.b16 %v387, %v386
      %v413 = vpack.c.b16 %v389, %v388
      %v414 = vpack.c.b16 %v391, %v390
      %v415 = vpack.c.b16 %v393, %v392
      %v416 = vpack.c.b16 %v395, %v394
      %v417 = vpack.c.b16 %v397, %v396
      %v418 = vpack.c.b16 %v399, %v398
      %v419 = vpack.c.b16 %v401, %v400
      %v420 = vpack.c.b16 %v403, %v402
      %v421 = vpack.c.b16 %v405, %v404
      %v422 = vpack.c.b16 %v407, %v406
      %v423 = vpack.c.b16 %v409, %v408
      %v424 = vpack.c.b16 %v411, %v410
      %v438 = vunpack.c.h.b16 %v179
      %v439 = vunpack.c.h.b16 %v181
      %v440 = vunpack.c.h.b16 %v183
      %v441 = vunpack.c.h.b16 %v185
      %v442 = vunpack.c.h.b16 %v187
      %v443 = vunpack.c.h.b16 %v189
      %v444 = vunpack.c.h.b16 %v191
      %v445 = vunpack.c.h.b16 %v193
      %v446 = vunpack.c.h.b16 %v195
      %v447 = vunpack.c.h.b16 %v197
      %v448 = vunpack.c.h.b16 %v199
      %v449 = vunpack.c.h.b16 %v201
      %v450 = vunpack.c.h.b16 %v203
      %v451 = vunpack.c.h.b16 %v205
      %v452 = vunpack.c.h.b16 %v207
      %v453 = vunpack.c.h.b16 %v209
      %v454 = vunpack.c.h.b16 %v211
      %v455 = vunpack.c.h.b16 %v213
      %v456 = vunpack.c.h.b16 %v215
      %v457 = vunpack.c.h.b16 %v217
      %v458 = vunpack.c.h.b16 %v219
      %v459 = vunpack.c.h.b16 %v221
      %v460 = vunpack.c.h.b16 %v223
      %v461 = vunpack.c.h.b16 %v225
      %v462 = vunpack.c.h.b16 %v227
      %v463 = vunpack.c.h.b16 %v229
      %v464 = vpack.c.b16 %v439, %v438
      %v465 = vpack.c.b16 %v441, %v440
      %v466 = vpack.c.b16 %v443, %v442
      %v467 = vpack.c.b16 %v445, %v444
      %v468 = vpack.c.b16 %v447, %v446
      %v469 = vpack.c.b16 %v449, %v448
      %v470 = vpack.c.b16 %v451, %v450
      %v471 = vpack.c.b16 %v453, %v452
      %v472 = vpack.c.b16 %v455, %v454
      %v473 = vpack.c.b16 %v457, %v456
      %v474 = vpack.c.b16 %v459, %v458
      %v475 = vpack.c.b16 %v461, %v460
      %v476 = vpack.c.b16 %v463, %v462
      %v490 = vld [vmem:[%s1] sm:$0xf]
      %v491 = vld [vmem:[%s1 + $0x4] sm:$0xf]
      %v492 = vld [vmem:[%s1 + $0x8] sm:$0xf]
      %v493 = vld [vmem:[%s1 + $0xc] sm:$0xf]
      %v494 = vld [vmem:[%s1 + $0x10] sm:$0xf]
      %v495 = vld [vmem:[%s1 + $0x14] sm:$0xf]
      %v496 = vld [vmem:[%s1 + $0x18] sm:$0xf]
      %v497 = vld [vmem:[%s1 + $0x1c] sm:$0xf]
      %v498 = vld [vmem:[%s1 + $0x20] sm:$0xf]
      %v499 = vld [vmem:[%s1 + $0x24] sm:$0xf]
      %v500 = vld [vmem:[%s1 + $0x28] sm:$0xf]
      %v501 = vld [vmem:[%s1 + $0x2c] sm:$0xf]
      %v502 = vld [vmem:[%s1 + $0x30] sm:$0xf]
      %v503 = vld [vmem:[%s1 + $0x34] sm:$0xf]
      %v504 = vld [vmem:[%s1 + $0x38] sm:$0xf]
      %v505 = vld [vmem:[%s1 + $0x3c] sm:$0xf]
      %v522 = vunpack.c.l.b16 %v490
      %v523 = vunpack.c.l.b16 %v491
      %v524 = vunpack.c.l.b16 %v492
      %v525 = vunpack.c.l.b16 %v493
      %v526 = vunpack.c.l.b16 %v494
      %v527 = vunpack.c.l.b16 %v495
      %v528 = vunpack.c.l.b16 %v496
      %v529 = vunpack.c.l.b16 %v497
      %v530 = vunpack.c.l.b16 %v498
      %v531 = vunpack.c.l.b16 %v499
      %v532 = vunpack.c.l.b16 %v500
      %v533 = vunpack.c.l.b16 %v501
      %v534 = vunpack.c.l.b16 %v502
      %v535 = vunpack.c.l.b16 %v503
      %v536 = vunpack.c.l.b16 %v504
      %v537 = vunpack.c.l.b16 %v505
      %v538 = vpack.c.b16 %v523, %v522
      %v539 = vpack.c.b16 %v525, %v524
      %v540 = vpack.c.b16 %v527, %v526
      %v541 = vpack.c.b16 %v529, %v528
      %v542 = vpack.c.b16 %v531, %v530
      %v543 = vpack.c.b16 %v533, %v532
      %v544 = vpack.c.b16 %v535, %v534
      %v545 = vpack.c.b16 %v537, %v536
      %554 = vmatprep.subr.bf16.mxu0 0
      %555 = vmatpush1.bf16.msra.mxu0 %v545
      %556 = vmatprep.subr.bf16.mxu0 0
      %557 = vmatpush1.bf16.msra.mxu0 %v544
      %558 = vmatprep.subr.bf16.mxu0 0
      %559 = vmatpush1.bf16.msra.mxu0 %v543
      %560 = vmatprep.subr.bf16.mxu0 0
      %561 = vmatpush1.bf16.msra.mxu0 %v542
      %562 = vmatprep.subr.bf16.mxu0 0
      %563 = vmatpush1.bf16.msra.mxu0 %v541
      %564 = vmatprep.subr.bf16.mxu0 0
      %565 = vmatpush1.bf16.msra.mxu0 %v540
      %566 = vmatprep.subr.bf16.mxu0 0
      %567 = vmatpush1.bf16.msra.mxu0 %v539
      %568 = vmatprep.subr.bf16.mxu0 0
      %569 = vmatpush1.bf16.msra.mxu0 %v538
      %570 = vmatprep.subr.bf16.mxu0 0
      %571 = vmatpush2.bf16.msra.mxu0 0
      %572 = vmatprep.subr.bf16.mxu0 0
      %573 = vmatpush2.bf16.msra.mxu0 0
      %574 = vmatprep.subr.bf16.mxu0 0
      %575 = vmatpush2.bf16.msra.mxu0 0
      %576 = vmatprep.subr.bf16.mxu0 0
      %577 = vmatpush2.bf16.msra.mxu0 0
      %578 = vmatprep.subr.bf16.mxu0 0
      %579 = vmatpush2.bf16.msra.mxu0 0
      %580 = vmatprep.subr.bf16.mxu0 0
      %581 = vmatpush2.bf16.msra.mxu0 0
      %582 = vmatprep.subr.bf16.mxu0 0
      %583 = vmatpush2.bf16.msra.mxu0 0
      %584 = vmatprep.subr.bf16.mxu0 0
      %585 = vmatpush2.bf16.msra.mxu0 0
      %586 = vmatprep.mubr.bf16.mxu0 0
      %587 = vmatmul.mubr.bf16.gmra.mxu0 %v282
      %v588 = vpop.f32.mrf.mxu0
      %v589 = vadd.f32 0.0, %v588
      %v590 = vpop.f32.mrf.mxu0
      %v591 = vpop.f32.mrf.mxu0
      %v592 = vadd.f32 0.0, %v591
      %v593 = vpop.f32.mrf.mxu0
      %594 = vmatprep.mubr.bf16.mxu0 0
      %595 = vmatmul.mubr.bf16.gmra.mxu0 %v283
      %v596 = vpop.f32.mrf.mxu0
      %v597 = vadd.f32 0.0, %v596
      %v598 = vpop.f32.mrf.mxu0
      %v599 = vpop.f32.mrf.mxu0
      %v600 = vadd.f32 0.0, %v599
      %v601 = vpop.f32.mrf.mxu0
      %602 = vmatprep.mubr.bf16.mxu0 0
      %603 = vmatmul.mubr.bf16.gmra.mxu0 %v284
      %v604 = vpop.f32.mrf.mxu0
      %v605 = vadd.f32 0.0, %v604
      %v606 = vpop.f32.mrf.mxu0
      %v607 = vpop.f32.mrf.mxu0
      %v608 = vadd.f32 0.0, %v607
      %v609 = vpop.f32.mrf.mxu0
      %610 = vmatprep.mubr.bf16.mxu0 0
      %611 = vmatmul.mubr.bf16.gmra.mxu0 %v285
      %v612 = vpop.f32.mrf.mxu0
      %v613 = vadd.f32 0.0, %v612
      %v614 = vpop.f32.mrf.mxu0
      %v615 = vpop.f32.mrf.mxu0
      %v616 = vadd.f32 0.0, %v615
      %v617 = vpop.f32.mrf.mxu0
      %618 = vmatprep.mubr.bf16.mxu0 0
      %619 = vmatmul.mubr.bf16.gmra.mxu0 %v286
      %v620 = vpop.f32.mrf.mxu0
      %v621 = vadd.f32 0.0, %v620
      %v622 = vpop.f32.mrf.mxu0
      %v623 = vpop.f32.mrf.mxu0
      %v624 = vadd.f32 0.0, %v623
      %v625 = vpop.f32.mrf.mxu0
      %626 = vmatprep.mubr.bf16.mxu0 0
      %627 = vmatmul.mubr.bf16.gmra.mxu0 %v287
      %v628 = vpop.f32.mrf.mxu0
      %v629 = vadd.f32 0.0, %v628
      %v630 = vpop.f32.mrf.mxu0
      %v631 = vpop.f32.mrf.mxu0
      %v632 = vadd.f32 0.0, %v631
      %v633 = vpop.f32.mrf.mxu0
      %634 = vmatprep.mubr.bf16.mxu0 0
      %635 = vmatmul.mubr.bf16.gmra.mxu0 %v288
      %v636 = vpop.f32.mrf.mxu0
      %v637 = vadd.f32 0.0, %v636
      %v638 = vpop.f32.mrf.mxu0
      %v639 = vpop.f32.mrf.mxu0
      %v640 = vadd.f32 0.0, %v639
      %v641 = vpop.f32.mrf.mxu0
      %642 = vmatprep.mubr.bf16.mxu0 0
      %643 = vmatmul.mubr.bf16.gmra.mxu0 %v289
      %v644 = vpop.f32.mrf.mxu0
      %v645 = vadd.f32 0.0, %v644
      %v646 = vpop.f32.mrf.mxu0
      %v647 = vpop.f32.mrf.mxu0
      %v648 = vadd.f32 0.0, %v647
      %v649 = vpop.f32.mrf.mxu0
      %650 = vmatprep.mubr.bf16.mxu0 0
      %651 = vmatmul.mubr.bf16.gmra.mxu0 %v290
      %v652 = vpop.f32.mrf.mxu0
      %v653 = vadd.f32 0.0, %v652
      %v654 = vpop.f32.mrf.mxu0
      %v655 = vpop.f32.mrf.mxu0
      %v656 = vadd.f32 0.0, %v655
      %v657 = vpop.f32.mrf.mxu0
      %658 = vmatprep.mubr.bf16.mxu0 0
      %659 = vmatmul.mubr.bf16.gmra.mxu0 %v291
      %v660 = vpop.f32.mrf.mxu0
      %v661 = vadd.f32 0.0, %v660
      %v662 = vpop.f32.mrf.mxu0
      %v663 = vpop.f32.mrf.mxu0
      %v664 = vadd.f32 0.0, %v663
      %v665 = vpop.f32.mrf.mxu0
      %666 = vmatprep.mubr.bf16.mxu0 0
      %667 = vmatmul.mubr.bf16.gmra.mxu0 %v292
      %v668 = vpop.f32.mrf.mxu0
      %v669 = vadd.f32 0.0, %v668
      %v670 = vpop.f32.mrf.mxu0
      %v671 = vpop.f32.mrf.mxu0
      %v672 = vadd.f32 0.0, %v671
      %v673 = vpop.f32.mrf.mxu0
      %674 = vmatprep.mubr.bf16.mxu0 0
      %675 = vmatmul.mubr.bf16.gmra.mxu0 %v293
      %v676 = vpop.f32.mrf.mxu0
      %v677 = vadd.f32 0.0, %v676
      %v678 = vpop.f32.mrf.mxu0
      %v679 = vpop.f32.mrf.mxu0
      %v680 = vadd.f32 0.0, %v679
      %v681 = vpop.f32.mrf.mxu0
      %682 = vmatprep.mubr.bf16.mxu0 0
      %683 = vmatmul.mubr.bf16.gmra.mxu0 %v294
      %v684 = vpop.f32.mrf.mxu0
      %v685 = vadd.f32 0.0, %v684
      %v686 = vpop.f32.mrf.mxu0
      %v687 = vpop.f32.mrf.mxu0
      %v688 = vadd.f32 0.0, %v687
      %v689 = vpop.f32.mrf.mxu0
      %690 = vmatprep.mubr.bf16.mxu0 0
      %691 = vmatmul.mubr.bf16.gmra.mxu0 %v334
      %v692 = vpop.f32.mrf.mxu0
      %v693 = vadd.f32 0.0, %v692
      %v694 = vpop.f32.mrf.mxu0
      %v695 = vpop.f32.mrf.mxu0
      %v696 = vadd.f32 0.0, %v695
      %v697 = vpop.f32.mrf.mxu0
      %698 = vmatprep.mubr.bf16.mxu0 0
      %699 = vmatmul.mubr.bf16.gmra.mxu0 %v335
      %v700 = vpop.f32.mrf.mxu0
      %v701 = vadd.f32 0.0, %v700
      %v702 = vpop.f32.mrf.mxu0
      %v703 = vpop.f32.mrf.mxu0
      %v704 = vadd.f32 0.0, %v703
      %v705 = vpop.f32.mrf.mxu0
      %706 = vmatprep.mubr.bf16.mxu0 0
      %707 = vmatmul.mubr.bf16.gmra.mxu0 %v336
      %v708 = vpop.f32.mrf.mxu0
      %v709 = vadd.f32 0.0, %v708
      %v710 = vpop.f32.mrf.mxu0
      %v711 = vpop.f32.mrf.mxu0
      %v712 = vadd.f32 0.0, %v711
      %v713 = vpop.f32.mrf.mxu0
      %714 = vmatprep.mubr.bf16.mxu0 0
      %715 = vmatmul.mubr.bf16.gmra.mxu0 %v337
      %v716 = vpop.f32.mrf.mxu0
      %v717 = vadd.f32 0.0, %v716
      %v718 = vpop.f32.mrf.mxu0
      %v719 = vpop.f32.mrf.mxu0
      %v720 = vadd.f32 0.0, %v719
      %v721 = vpop.f32.mrf.mxu0
      %722 = vmatprep.mubr.bf16.mxu0 0
      %723 = vmatmul.mubr.bf16.gmra.mxu0 %v338
      %v724 = vpop.f32.mrf.mxu0
      %v725 = vadd.f32 0.0, %v724
      %v726 = vpop.f32.mrf.mxu0
      %v727 = vpop.f32.mrf.mxu0
      %v728 = vadd.f32 0.0, %v727
      %v729 = vpop.f32.mrf.mxu0
      %730 = vmatprep.mubr.bf16.mxu0 0
      %731 = vmatmul.mubr.bf16.gmra.mxu0 %v339
      %v732 = vpop.f32.mrf.mxu0
      %v733 = vadd.f32 0.0, %v732
      %v734 = vpop.f32.mrf.mxu0
      %v735 = vpop.f32.mrf.mxu0
      %v736 = vadd.f32 0.0, %v735
      %v737 = vpop.f32.mrf.mxu0
      %738 = vmatprep.mubr.bf16.mxu0 0
      %739 = vmatmul.mubr.bf16.gmra.mxu0 %v340
      %v740 = vpop.f32.mrf.mxu0
      %v741 = vadd.f32 0.0, %v740
      %v742 = vpop.f32.mrf.mxu0
      %v743 = vpop.f32.mrf.mxu0
      %v744 = vadd.f32 0.0, %v743
      %v745 = vpop.f32.mrf.mxu0
      %746 = vmatprep.mubr.bf16.mxu0 0
      %747 = vmatmul.mubr.bf16.gmra.mxu0 %v341
      %v748 = vpop.f32.mrf.mxu0
      %v749 = vadd.f32 0.0, %v748
      %v750 = vpop.f32.mrf.mxu0
      %v751 = vpop.f32.mrf.mxu0
      %v752 = vadd.f32 0.0, %v751
      %v753 = vpop.f32.mrf.mxu0
      %754 = vmatprep.mubr.bf16.mxu0 0
      %755 = vmatmul.mubr.bf16.gmra.mxu0 %v342
      %v756 = vpop.f32.mrf.mxu0
      %v757 = vadd.f32 0.0, %v756
      %v758 = vpop.f32.mrf.mxu0
      %v759 = vpop.f32.mrf.mxu0
      %v760 = vadd.f32 0.0, %v759
      %v761 = vpop.f32.mrf.mxu0
      %762 = vmatprep.mubr.bf16.mxu0 0
      %763 = vmatmul.mubr.bf16.gmra.mxu0 %v343
      %v764 = vpop.f32.mrf.mxu0
      %v765 = vadd.f32 0.0, %v764
      %v766 = vpop.f32.mrf.mxu0
      %v767 = vpop.f32.mrf.mxu0
      %v768 = vadd.f32 0.0, %v767
      %v769 = vpop.f32.mrf.mxu0
      %770 = vmatprep.mubr.bf16.mxu0 0
      %771 = vmatmul.mubr.bf16.gmra.mxu0 %v344
      %v772 = vpop.f32.mrf.mxu0
      %v773 = vadd.f32 0.0, %v772
      %v774 = vpop.f32.mrf.mxu0
      %v775 = vpop.f32.mrf.mxu0
      %v776 = vadd.f32 0.0, %v775
      %v777 = vpop.f32.mrf.mxu0
      %778 = vmatprep.mubr.bf16.mxu0 0
      %779 = vmatmul.mubr.bf16.gmra.mxu0 %v345
      %v780 = vpop.f32.mrf.mxu0
      %v781 = vadd.f32 0.0, %v780
      %v782 = vpop.f32.mrf.mxu0
      %v783 = vpop.f32.mrf.mxu0
      %v784 = vadd.f32 0.0, %v783
      %v785 = vpop.f32.mrf.mxu0
      %786 = vmatprep.mubr.bf16.mxu0 0
      %787 = vmatmul.mubr.bf16.gmra.mxu0 %v346
      %v788 = vpop.f32.mrf.mxu0
      %v789 = vadd.f32 0.0, %v788
      %v790 = vpop.f32.mrf.mxu0
      %v791 = vpop.f32.mrf.mxu0
      %v792 = vadd.f32 0.0, %v791
      %v793 = vpop.f32.mrf.mxu0
      %794 = vmatprep.mubr.bf16.mxu0 0
      %795 = vmatmul.mubr.bf16.gmra.mxu0 %v412
      %v796 = vpop.f32.mrf.mxu0
      %v797 = vadd.f32 0.0, %v796
      %v798 = vpop.f32.mrf.mxu0
      %v799 = vpop.f32.mrf.mxu0
      %v800 = vadd.f32 0.0, %v799
      %v801 = vpop.f32.mrf.mxu0
      %802 = vmatprep.mubr.bf16.mxu0 0
      %803 = vmatmul.mubr.bf16.gmra.mxu0 %v413
      %v804 = vpop.f32.mrf.mxu0
      %v805 = vadd.f32 0.0, %v804
      %v806 = vpop.f32.mrf.mxu0
      %v807 = vpop.f32.mrf.mxu0
      %v808 = vadd.f32 0.0, %v807
      %v809 = vpop.f32.mrf.mxu0
      %810 = vmatprep.mubr.bf16.mxu0 0
      %811 = vmatmul.mubr.bf16.gmra.mxu0 %v414
      %v812 = vpop.f32.mrf.mxu0
      %v813 = vadd.f32 0.0, %v812
      %v814 = vpop.f32.mrf.mxu0
      %v815 = vpop.f32.mrf.mxu0
      %v816 = vadd.f32 0.0, %v815
      %v817 = vpop.f32.mrf.mxu0
      %818 = vmatprep.mubr.bf16.mxu0 0
      %819 = vmatmul.mubr.bf16.gmra.mxu0 %v415
      %v820 = vpop.f32.mrf.mxu0
      %v821 = vadd.f32 0.0, %v820
      %v822 = vpop.f32.mrf.mxu0
      %v823 = vpop.f32.mrf.mxu0
      %v824 = vadd.f32 0.0, %v823
      %v825 = vpop.f32.mrf.mxu0
      %826 = vmatprep.mubr.bf16.mxu0 0
      %827 = vmatmul.mubr.bf16.gmra.mxu0 %v416
      %v828 = vpop.f32.mrf.mxu0
      %v829 = vadd.f32 0.0, %v828
      %v830 = vpop.f32.mrf.mxu0
      %v831 = vpop.f32.mrf.mxu0
      %v832 = vadd.f32 0.0, %v831
      %v833 = vpop.f32.mrf.mxu0
      %834 = vmatprep.mubr.bf16.mxu0 0
      %835 = vmatmul.mubr.bf16.gmra.mxu0 %v417
      %v836 = vpop.f32.mrf.mxu0
      %v837 = vadd.f32 0.0, %v836
      %v838 = vpop.f32.mrf.mxu0
      %v839 = vpop.f32.mrf.mxu0
      %v840 = vadd.f32 0.0, %v839
      %v841 = vpop.f32.mrf.mxu0
      %842 = vmatprep.mubr.bf16.mxu0 0
      %843 = vmatmul.mubr.bf16.gmra.mxu0 %v418
      %v844 = vpop.f32.mrf.mxu0
      %v845 = vadd.f32 0.0, %v844
      %v846 = vpop.f32.mrf.mxu0
      %v847 = vpop.f32.mrf.mxu0
      %v848 = vadd.f32 0.0, %v847
      %v849 = vpop.f32.mrf.mxu0
      %850 = vmatprep.mubr.bf16.mxu0 0
      %851 = vmatmul.mubr.bf16.gmra.mxu0 %v419
      %v852 = vpop.f32.mrf.mxu0
      %v853 = vadd.f32 0.0, %v852
      %v854 = vpop.f32.mrf.mxu0
      %v855 = vpop.f32.mrf.mxu0
      %v856 = vadd.f32 0.0, %v855
      %v857 = vpop.f32.mrf.mxu0
      %858 = vmatprep.mubr.bf16.mxu0 0
      %859 = vmatmul.mubr.bf16.gmra.mxu0 %v420
      %v860 = vpop.f32.mrf.mxu0
      %v861 = vadd.f32 0.0, %v860
      %v862 = vpop.f32.mrf.mxu0
      %v863 = vpop.f32.mrf.mxu0
      %v864 = vadd.f32 0.0, %v863
      %v865 = vpop.f32.mrf.mxu0
      %866 = vmatprep.mubr.bf16.mxu0 0
      %867 = vmatmul.mubr.bf16.gmra.mxu0 %v421
      %v868 = vpop.f32.mrf.mxu0
      %v869 = vadd.f32 0.0, %v868
      %v870 = vpop.f32.mrf.mxu0
      %v871 = vpop.f32.mrf.mxu0
      %v872 = vadd.f32 0.0, %v871
      %v873 = vpop.f32.mrf.mxu0
      %874 = vmatprep.mubr.bf16.mxu0 0
      %875 = vmatmul.mubr.bf16.gmra.mxu0 %v422
      %v876 = vpop.f32.mrf.mxu0
      %v877 = vadd.f32 0.0, %v876
      %v878 = vpop.f32.mrf.mxu0
      %v879 = vpop.f32.mrf.mxu0
      %v880 = vadd.f32 0.0, %v879
      %v881 = vpop.f32.mrf.mxu0
      %882 = vmatprep.mubr.bf16.mxu0 0
      %883 = vmatmul.mubr.bf16.gmra.mxu0 %v423
      %v884 = vpop.f32.mrf.mxu0
      %v885 = vadd.f32 0.0, %v884
      %v886 = vpop.f32.mrf.mxu0
      %v887 = vpop.f32.mrf.mxu0
      %v888 = vadd.f32 0.0, %v887
      %v889 = vpop.f32.mrf.mxu0
      %890 = vmatprep.mubr.bf16.mxu0 0
      %891 = vmatmul.mubr.bf16.gmra.mxu0 %v424
      %v892 = vpop.f32.mrf.mxu0
      %v893 = vadd.f32 0.0, %v892
      %v894 = vpop.f32.mrf.mxu0
      %v895 = vpop.f32.mrf.mxu0
      %v896 = vadd.f32 0.0, %v895
      %v897 = vpop.f32.mrf.mxu0
      %898 = vmatprep.mubr.bf16.mxu0 0
      %899 = vmatmul.mubr.bf16.gmra.mxu0 %v464
      %v900 = vpop.f32.mrf.mxu0
      %v901 = vadd.f32 0.0, %v900
      %v902 = vpop.f32.mrf.mxu0
      %v903 = vpop.f32.mrf.mxu0
      %v904 = vadd.f32 0.0, %v903
      %v905 = vpop.f32.mrf.mxu0
      %906 = vmatprep.mubr.bf16.mxu0 0
      %907 = vmatmul.mubr.bf16.gmra.mxu0 %v465
      %v908 = vpop.f32.mrf.mxu0
      %v909 = vadd.f32 0.0, %v908
      %v910 = vpop.f32.mrf.mxu0
      %v911 = vpop.f32.mrf.mxu0
      %v912 = vadd.f32 0.0, %v911
      %v913 = vpop.f32.mrf.mxu0
      %914 = vmatprep.mubr.bf16.mxu0 0
      %915 = vmatmul.mubr.bf16.gmra.mxu0 %v466
      %v916 = vpop.f32.mrf.mxu0
      %v917 = vadd.f32 0.0, %v916
      %v918 = vpop.f32.mrf.mxu0
      %v919 = vpop.f32.mrf.mxu0
      %v920 = vadd.f32 0.0, %v919
      %v921 = vpop.f32.mrf.mxu0
      %922 = vmatprep.mubr.bf16.mxu0 0
      %923 = vmatmul.mubr.bf16.gmra.mxu0 %v467
      %v924 = vpop.f32.mrf.mxu0
      %v925 = vadd.f32 0.0, %v924
      %v926 = vpop.f32.mrf.mxu0
      %v927 = vpop.f32.mrf.mxu0
      %v928 = vadd.f32 0.0, %v927
      %v929 = vpop.f32.mrf.mxu0
      %930 = vmatprep.mubr.bf16.mxu0 0
      %931 = vmatmul.mubr.bf16.gmra.mxu0 %v468
      %v932 = vpop.f32.mrf.mxu0
      %v933 = vadd.f32 0.0, %v932
      %v934 = vpop.f32.mrf.mxu0
      %v935 = vpop.f32.mrf.mxu0
      %v936 = vadd.f32 0.0, %v935
      %v937 = vpop.f32.mrf.mxu0
      %938 = vmatprep.mubr.bf16.mxu0 0
      %939 = vmatmul.mubr.bf16.gmra.mxu0 %v469
      %v940 = vpop.f32.mrf.mxu0
      %v941 = vadd.f32 0.0, %v940
      %v942 = vpop.f32.mrf.mxu0
      %v943 = vpop.f32.mrf.mxu0
      %v944 = vadd.f32 0.0, %v943
      %v945 = vpop.f32.mrf.mxu0
      %946 = vmatprep.mubr.bf16.mxu0 0
      %947 = vmatmul.mubr.bf16.gmra.mxu0 %v470
      %v948 = vpop.f32.mrf.mxu0
      %v949 = vadd.f32 0.0, %v948
      %v950 = vpop.f32.mrf.mxu0
      %v951 = vpop.f32.mrf.mxu0
      %v952 = vadd.f32 0.0, %v951
      %v953 = vpop.f32.mrf.mxu0
      %954 = vmatprep.mubr.bf16.mxu0 0
      %955 = vmatmul.mubr.bf16.gmra.mxu0 %v471
      %v956 = vpop.f32.mrf.mxu0
      %v957 = vadd.f32 0.0, %v956
      %v958 = vpop.f32.mrf.mxu0
      %v959 = vpop.f32.mrf.mxu0
      %v960 = vadd.f32 0.0, %v959
      %v961 = vpop.f32.mrf.mxu0
      %962 = vmatprep.mubr.bf16.mxu0 0
      %963 = vmatmul.mubr.bf16.gmra.mxu0 %v472
      %v964 = vpop.f32.mrf.mxu0
      %v965 = vadd.f32 0.0, %v964
      %v966 = vpop.f32.mrf.mxu0
      %v967 = vpop.f32.mrf.mxu0
      %v968 = vadd.f32 0.0, %v967
      %v969 = vpop.f32.mrf.mxu0
      %970 = vmatprep.mubr.bf16.mxu0 0
      %971 = vmatmul.mubr.bf16.gmra.mxu0 %v473
      %v972 = vpop.f32.mrf.mxu0
      %v973 = vadd.f32 0.0, %v972
      %v974 = vpop.f32.mrf.mxu0
      %v975 = vpop.f32.mrf.mxu0
      %v976 = vadd.f32 0.0, %v975
      %v977 = vpop.f32.mrf.mxu0
      %978 = vmatprep.mubr.bf16.mxu0 0
      %979 = vmatmul.mubr.bf16.gmra.mxu0 %v474
      %v980 = vpop.f32.mrf.mxu0
      %v981 = vadd.f32 0.0, %v980
      %v982 = vpop.f32.mrf.mxu0
      %v983 = vpop.f32.mrf.mxu0
      %v984 = vadd.f32 0.0, %v983
      %v985 = vpop.f32.mrf.mxu0
      %986 = vmatprep.mubr.bf16.mxu0 0
      %987 = vmatmul.mubr.bf16.gmra.mxu0 %v475
      %v988 = vpop.f32.mrf.mxu0
      %v989 = vadd.f32 0.0, %v988
      %v990 = vpop.f32.mrf.mxu0
      %v991 = vpop.f32.mrf.mxu0
      %v992 = vadd.f32 0.0, %v991
      %v993 = vpop.f32.mrf.mxu0
      %994 = vmatprep.mubr.bf16.mxu0 0
      %995 = vmatmul.mubr.bf16.gmra.mxu0 %v476
      %v996 = vpop.f32.mrf.mxu0
      %v997 = vadd.f32 0.0, %v996
      %v998 = vpop.f32.mrf.mxu0
      %v999 = vpop.f32.mrf.mxu0
      %v1000 = vadd.f32 0.0, %v999
      %v1001 = vpop.f32.mrf.mxu0
      %1002 = vdwg.mxu0
      %v1003 = vmax.f32 %v589, %v693
      %v1004 = vmax.f32 %v592, %v696
      %v1005 = vmax.f32 %v597, %v701
      %v1006 = vmax.f32 %v600, %v704
      %v1007 = vmax.f32 %v605, %v709
      %v1008 = vmax.f32 %v608, %v712
      %v1009 = vmax.f32 %v613, %v717
      %v1010 = vmax.f32 %v616, %v720
      %v1011 = vmax.f32 %v621, %v725
      %v1012 = vmax.f32 %v624, %v728
      %v1013 = vmax.f32 %v629, %v733
      %v1014 = vmax.f32 %v632, %v736
      %v1015 = vmax.f32 %v637, %v741
      %v1016 = vmax.f32 %v640, %v744
      %v1017 = vmax.f32 %v645, %v749
      %v1018 = vmax.f32 %v648, %v752
      %v1019 = vmax.f32 %v653, %v757
      %v1020 = vmax.f32 %v656, %v760
      %v1021 = vmax.f32 %v661, %v765
      %v1022 = vmax.f32 %v664, %v768
      %v1023 = vmax.f32 %v669, %v773
      %v1024 = vmax.f32 %v672, %v776
      %v1025 = vmax.f32 %v677, %v781
      %v1026 = vmax.f32 %v680, %v784
      %v1027 = vmax.f32 %v685, %v789
      %v1028 = vmax.f32 %v688, %v792
      %v1029 = vmax.f32 %v797, %v901
      %v1030 = vmax.f32 %v800, %v904
      %v1031 = vmax.f32 %v805, %v909
      %v1032 = vmax.f32 %v808, %v912
      %v1033 = vmax.f32 %v813, %v917
      %v1034 = vmax.f32 %v816, %v920
      %v1035 = vmax.f32 %v821, %v925
      %v1036 = vmax.f32 %v824, %v928
      %v1037 = vmax.f32 %v829, %v933
      %v1038 = vmax.f32 %v832, %v936
      %v1039 = vmax.f32 %v837, %v941
      %v1040 = vmax.f32 %v840, %v944
      %v1041 = vmax.f32 %v845, %v949
      %v1042 = vmax.f32 %v848, %v952
      %v1043 = vmax.f32 %v853, %v957
      %v1044 = vmax.f32 %v856, %v960
      %v1045 = vmax.f32 %v861, %v965
      %v1046 = vmax.f32 %v864, %v968
      %v1047 = vmax.f32 %v869, %v973
      %v1048 = vmax.f32 %v872, %v976
      %v1049 = vmax.f32 %v877, %v981
      %v1050 = vmax.f32 %v880, %v984
      %v1051 = vmax.f32 %v885, %v989
      %v1052 = vmax.f32 %v888, %v992
      %v1053 = vmax.f32 %v893, %v997
      %v1054 = vmax.f32 %v896, %v1000
      %v1055 = vmax.f32 %v1003, %v1029
      %v1056 = vmax.f32 %v1004, %v1030
      %v1057 = vmax.f32 %v1005, %v1031
      %v1058 = vmax.f32 %v1006, %v1032
      %v1059 = vmax.f32 %v1007, %v1033
      %v1060 = vmax.f32 %v1008, %v1034
      %v1061 = vmax.f32 %v1009, %v1035
      %v1062 = vmax.f32 %v1010, %v1036
      %v1063 = vmax.f32 %v1011, %v1037
      %v1064 = vmax.f32 %v1012, %v1038
      %v1065 = vmax.f32 %v1013, %v1039
      %v1066 = vmax.f32 %v1014, %v1040
      %v1067 = vmax.f32 %v1015, %v1041
      %v1068 = vmax.f32 %v1016, %v1042
      %v1069 = vmax.f32 %v1017, %v1043
      %v1070 = vmax.f32 %v1018, %v1044
      %v1071 = vmax.f32 %v1019, %v1045
      %v1072 = vmax.f32 %v1020, %v1046
      %v1073 = vmax.f32 %v1021, %v1047
      %v1074 = vmax.f32 %v1022, %v1048
      %v1075 = vmax.f32 %v1023, %v1049
      %v1076 = vmax.f32 %v1024, %v1050
      %v1077 = vmax.f32 %v1025, %v1051
      %v1078 = vmax.f32 %v1026, %v1052
      %v1079 = vmax.f32 %v1027, %v1053
      %v1080 = vmax.f32 %v1028, %v1054
      %v1081 = vld [vmem:[%s2] sm:$0x1]
      %v1083 = vlaneseq
      %v1084 = vshrl.u32 %v1083, 7
      %v1085 = vsub.s32 0, %v1084
      %v1086 = vrot.slane %v1081, %v1085
      %v1088 = vadd.f32 %v1055, %v1086
      %v1089 = vadd.f32 %v1056, %v1086
      %v1090 = vadd.f32 %v1057, %v1086
      %v1091 = vadd.f32 %v1058, %v1086
      %v1092 = vadd.f32 %v1059, %v1086
      %v1093 = vadd.f32 %v1060, %v1086
      %v1094 = vadd.f32 %v1061, %v1086
      %v1095 = vadd.f32 %v1062, %v1086
      %v1096 = vadd.f32 %v1063, %v1086
      %v1097 = vadd.f32 %v1064, %v1086
      %v1098 = vadd.f32 %v1065, %v1086
      %v1099 = vadd.f32 %v1066, %v1086
      %v1100 = vadd.f32 %v1067, %v1086
      %v1101 = vadd.f32 %v1068, %v1086
      %v1102 = vadd.f32 %v1069, %v1086
      %v1103 = vadd.f32 %v1070, %v1086
      %v1104 = vadd.f32 %v1071, %v1086
      %v1105 = vadd.f32 %v1072, %v1086
      %v1106 = vadd.f32 %v1073, %v1086
      %v1107 = vadd.f32 %v1074, %v1086
      %v1108 = vadd.f32 %v1075, %v1086
      %v1109 = vadd.f32 %v1076, %v1086
      %v1110 = vadd.f32 %v1077, %v1086
      %v1111 = vadd.f32 %v1078, %v1086
      %v1112 = vadd.f32 %v1079, %v1086
      %v1113 = vadd.f32 %v1080, %v1086
      %v1114 = vmax.f32 %v1088, 0.0
      %v1115 = vmax.f32 %v1089, 0.0
      %v1116 = vmax.f32 %v1090, 0.0
      %v1117 = vmax.f32 %v1091, 0.0
      %v1118 = vmax.f32 %v1092, 0.0
      %v1119 = vmax.f32 %v1093, 0.0
      %v1120 = vmax.f32 %v1094, 0.0
      %v1121 = vmax.f32 %v1095, 0.0
      %v1122 = vmax.f32 %v1096, 0.0
      %v1123 = vmax.f32 %v1097, 0.0
      %v1124 = vmax.f32 %v1098, 0.0
      %v1125 = vmax.f32 %v1099, 0.0
      %v1126 = vmax.f32 %v1100, 0.0
      %v1127 = vmax.f32 %v1101, 0.0
      %v1128 = vmax.f32 %v1102, 0.0
      %v1129 = vmax.f32 %v1103, 0.0
      %v1130 = vmax.f32 %v1104, 0.0
      %v1131 = vmax.f32 %v1105, 0.0
      %v1132 = vmax.f32 %v1106, 0.0
      %v1133 = vmax.f32 %v1107, 0.0
      %v1134 = vmax.f32 %v1108, 0.0
      %v1135 = vmax.f32 %v1109, 0.0
      %v1136 = vmax.f32 %v1110, 0.0
      %v1137 = vmax.f32 %v1111, 0.0
      %v1138 = vmax.f32 %v1112, 0.0
      %v1139 = vmax.f32 %v1113, 0.0
      %v1140 = vpack.c.bf16 %v1115, %v1114
      %v1141 = vpack.c.bf16 %v1117, %v1116
      %v1142 = vpack.c.bf16 %v1119, %v1118
      %v1143 = vpack.c.bf16 %v1121, %v1120
      %v1144 = vpack.c.bf16 %v1123, %v1122
      %v1145 = vpack.c.bf16 %v1125, %v1124
      %v1146 = vpack.c.bf16 %v1127, %v1126
      %v1147 = vpack.c.bf16 %v1129, %v1128
      %v1148 = vpack.c.bf16 %v1131, %v1130
      %v1149 = vpack.c.bf16 %v1133, %v1132
      %v1150 = vpack.c.bf16 %v1135, %v1134
      %v1151 = vpack.c.bf16 %v1137, %v1136
      %v1152 = vpack.c.bf16 %v1139, %v1138
      %v1166 = vunpack.c.l.b16 %v1140
      %v1167 = vunpack.c.h.b16 %v1140
      %v1168 = vunpack.c.l.b16 %v1141
      %v1169 = vunpack.c.h.b16 %v1141
      %v1170 = vunpack.c.l.b16 %v1142
      %v1171 = vunpack.c.h.b16 %v1142
      %v1172 = vunpack.c.l.b16 %v1143
      %v1173 = vunpack.c.h.b16 %v1143
      %v1174 = vunpack.c.l.b16 %v1144
      %v1175 = vunpack.c.h.b16 %v1144
      %v1176 = vunpack.c.l.b16 %v1145
      %v1177 = vunpack.c.h.b16 %v1145
      %v1178 = vunpack.c.l.b16 %v1146
      %v1179 = vunpack.c.h.b16 %v1146
      %v1180 = vunpack.c.l.b16 %v1147
      %v1181 = vunpack.c.h.b16 %v1147
      %v1182 = vunpack.c.l.b16 %v1148
      %v1183 = vunpack.c.h.b16 %v1148
      %v1184 = vunpack.c.l.b16 %v1149
      %v1185 = vunpack.c.h.b16 %v1149
      %v1186 = vunpack.c.l.b16 %v1150
      %v1187 = vunpack.c.h.b16 %v1150
      %v1188 = vunpack.c.l.b16 %v1151
      %v1189 = vunpack.c.h.b16 %v1151
      %v1190 = vunpack.c.l.b16 %v1152
      %v1191 = vunpack.c.h.b16 %v1152
      %v1192 = vpack.c.b16 %v1166, %v1166
      %v1193 = vpack.c.b16 %v1167, %v1167
      %v1194 = vpack.c.b16 %v1168, %v1168
      %v1195 = vpack.c.b16 %v1169, %v1169
      %v1196 = vpack.c.b16 %v1170, %v1170
      %v1197 = vpack.c.b16 %v1171, %v1171
      %v1198 = vpack.c.b16 %v1172, %v1172
      %v1199 = vpack.c.b16 %v1173, %v1173
      %v1200 = vpack.c.b16 %v1174, %v1174
      %v1201 = vpack.c.b16 %v1175, %v1175
      %v1202 = vpack.c.b16 %v1176, %v1176
      %v1203 = vpack.c.b16 %v1177, %v1177
      %v1204 = vpack.c.b16 %v1178, %v1178
      %v1205 = vpack.c.b16 %v1179, %v1179
      %v1206 = vpack.c.b16 %v1180, %v1180
      %v1207 = vpack.c.b16 %v1181, %v1181
      %v1208 = vpack.c.b16 %v1182, %v1182
      %v1209 = vpack.c.b16 %v1183, %v1183
      %v1210 = vpack.c.b16 %v1184, %v1184
      %v1211 = vpack.c.b16 %v1185, %v1185
      %v1212 = vpack.c.b16 %v1186, %v1186
      %v1213 = vpack.c.b16 %v1187, %v1187
      %v1214 = vpack.c.b16 %v1188, %v1188
      %v1215 = vpack.c.b16 %v1189, %v1189
      %v1216 = vpack.c.b16 %v1190, %v1190
      %v1217 = vpack.c.b16 %v1191, %v1191
      %1244 = vst [vmem:[%s175] sm:$0xf] %v1192
      %1245 = vst [vmem:[%s175 + $0x4] sm:$0xf] %v1193
      %1246 = vst [vmem:[%s175 + $0x8] sm:$0xf] %v1194
      %1247 = vst [vmem:[%s175 + $0xc] sm:$0xf] %v1195
      %1248 = vst [vmem:[%s175 + $0x10] sm:$0xf] %v1196
      %1249 = vst [vmem:[%s175 + $0x14] sm:$0xf] %v1197
      %1250 = vst [vmem:[%s175 + $0x18] sm:$0xf] %v1198
      %1251 = vst [vmem:[%s175 + $0x1c] sm:$0xf] %v1199
      %1252 = vst [vmem:[%s175 + $0x20] sm:$0xf] %v1200
      %1253 = vst [vmem:[%s175 + $0x24] sm:$0xf] %v1201
      %1254 = vst [vmem:[%s175 + $0x28] sm:$0xf] %v1202
      %1255 = vst [vmem:[%s175 + $0x2c] sm:$0xf] %v1203
      %1256 = vst [vmem:[%s175 + $0x30] sm:$0xf] %v1204
      %1257 = vst [vmem:[%s175 + $0x34] sm:$0xf] %v1205
      %1258 = vst [vmem:[%s175 + $0x38] sm:$0xf] %v1206
      %1259 = vst [vmem:[%s175 + $0x3c] sm:$0xf] %v1207
      %1260 = vst [vmem:[%s175 + $0x40] sm:$0xf] %v1208
      %1261 = vst [vmem:[%s175 + $0x44] sm:$0xf] %v1209
      %1262 = vst [vmem:[%s175 + $0x48] sm:$0xf] %v1210
      %1263 = vst [vmem:[%s175 + $0x4c] sm:$0xf] %v1211
      %1264 = vst [vmem:[%s175 + $0x50] sm:$0xf] %v1212
      %1265 = vst [vmem:[%s175 + $0x54] sm:$0xf] %v1213
      %1266 = vst [vmem:[%s175 + $0x58] sm:$0xf] %v1214
      %1267 = vst [vmem:[%s175 + $0x5c] sm:$0xf] %v1215
      %1268 = vst [vmem:[%s175 + $0x60] sm:$0xf] %v1216
      %1269 = vst [vmem:[%s175 + $0x64] sm:$0xf] %v1217
      %s1270 = smul.u32 26, %s14
      %p1271 = scmp.lt.s32.totalorder %s1270, 51
      %s1272 = scalar_select %p1271, %s1270, 51
      %s1273 = smul.addr %s1272, 4
      %s1274 = scalar_lea.vmem %s3, %s1273
      // Predicated region
      $region33: #{_lambda_.3} parent=31 // pred_check
        %p1275 = pneg %p100
      $region34: #{_lambda_.3} parent=31 // pred_check_branch
        %1277 = sbr.rel (%p1275) target = $region36
      $region35: #{_lambda_.3} parent=31 // pred_region
        %s1278 = smul.u32 26, %s14
      $region36: #{_lambda_.3} parent=31 // pred_fallthru
        _
    $region32: #{_lambda_.3} parent=5 // pred_fallthru
      _
    %p1279 = scmp.le.s32.totalorder 2, %s9
    // Predicated region
    $region37: #{_lambda_.3} parent=5 // pred_check
      %p1280 = pneg %p1279
    $region38: #{_lambda_.3} parent=5 // pred_check_branch
      %1282 = sbr.rel (%p1280) target = $region40
    $region39: #{_lambda_.3} parent=5 // pred_region
      %s1283 = ssub.s32 %s9, 2
      // Predicated region
      $region41: #{_lambda_.3} parent=39 // pred_check
        %p1284 = pneg %p106
      $region42: #{_lambda_.3} parent=39 // pred_check_branch
        %1286 = sbr.rel (%p1284) target = $region44
      $region43: #{_lambda_.3} parent=39 // pred_region
        %s1287 = smul.u32 26, %s15
        %p1288 = scmp.lt.s32.totalorder %s1287, 51
        %s1289 = scalar_select %p1288, %s1287, 51
        %s1290 = smul.addr %s1289, 4
        %s1291 = scalar_lea.vmem %s3, %s1290
      $region44: #{_lambda_.3} parent=39 // pred_fallthru
        _
    $region40: #{_lambda_.3} parent=5 // pred_fallthru
      _
  $region6: #{_lambda_.3} parent=0 // loop_footer
    %s13 = sadd.s32 1, %s9
  $region7: #{_lambda_.3} parent=0 // loop_footer_branch
    %8 = sbr.rel target = $region3
  $region8: #{_lambda_.3} parent=0 // loop_exit
    _

// kernel: _lambda_.4
$region0: #{_lambda_.4}
  #allocation0 [shape = 'u32[]', space=smem, size = 0x4, offset = 0x4, fixed_abs, tag = 'smem constant byte address 0x4 - core index']
  #allocation1 [shape = 'u32[144,128]{1,0:T(1,128)}', space=vmem, size = 0x12000, scoped, tag = 'internal scratch']
  %s0 = inlined_call_operand.vmem [shape: bf16[64,1024], index: 0, kind: input, shape index: {}]
  %s1 = inlined_call_operand.vmem [shape: bf16[256,128], index: 1, kind: input, shape index: {}]
  %s2 = inlined_call_operand.vmem [shape: f32[1,128], index: 2, kind: input, shape index: {}]
  %s3 = inlined_call_operand.vmem [shape: bf16[64,128], index: 3, kind: output, shape index: {}]
  %s4 = sld [smem:[#allocation0]]
  $region45: #{_lambda_.4} parent=0
    _
  %s6 = ssub.s32 1, %s4
  %s7 = scalar_select 0, %s6, %s4
  loop: start=0, step=1, limit=4
  $region2: #{_lambda_.4} parent=0 // loop_pre_header
    _
  $region3: #{_lambda_.4} parent=0 // loop_header
    %s9 = sphi 0, %s13
    %p10 = scmp.ge.s32.totalorder %s9, 4
    %s19 = sphi 0, %s21
    %s22 = sphi 0, %s19
    %s23 = sphi 0, %s22
    %s39 = sphi 0, %s23
    %s43 = sphi 0, %s43
    %s45 = sphi 0, %s43
    %s46 = sphi 0, %s45
    %s60 = sphi 0, %s46
    %s64 = sphi 0, %s64
    %s66 = sphi 0, %s64
    %s67 = sphi 0, %s66
    %s81 = sphi 0, %s67
    %s87 = sphi 0, %s89
    %s90 = sphi 0, %s87
    %s91 = sphi 0, %s90
    %s107 = sphi 0, %s91
  $region4: #{_lambda_.4} parent=0 // loop_header_branch
    %12 = sbr.rel (%p10) target = $region8
  $region5: #{_lambda_.4} parent=0 // loop_body
    %s14 = ssub.s32 %s9, 1
    %s15 = ssub.s32 %s9, 2
    %s16 = sadd.s32 %s9, 1
    %s17 = ssub.s32 %s9, %s16
    %p18 = scmp.eq.s32.totalorder %s17, 0
    %s20 = sadd.s32 %s19, 1
    %s21 = scalar_select %p18, %s19, %s20
    %p24 = pneg %p18
    %p25 = scmp.eq.s32.totalorder %s9, 1
    %p26 = por %p24, %p25
    %p27 = scmp.ne.s32.totalorder %s19, %s22
    %p28 = scmp.eq.s32.totalorder %s9, 0
    %p29 = por %p27, %p28
    %p30 = scmp.ne.s32.totalorder %s19, %s22
    %p31 = scmp.eq.s32.totalorder %s14, 1
    %p32 = por %p30, %p31
    %p33 = scmp.ne.s32.totalorder %s22, %s23
    %p34 = scmp.eq.s32.totalorder %s14, 0
    %p35 = por %p33, %p34
    %p36 = scmp.ne.s32.totalorder %s22, %s23
    %p37 = scmp.eq.s32.totalorder %s15, 1
    %p38 = por %p36, %p37
    %p40 = scmp.ne.s32.totalorder %s23, %s39
    %p41 = scmp.eq.s32.totalorder %s15, 0
    %p42 = por %p40, %p41
    %s44 = sadd.s32 %s43, 1
    %p47 = scmp.eq.s32.totalorder %s9, 1
    %p48 = scmp.ne.s32.totalorder %s43, %s45
    %p49 = scmp.eq.s32.totalorder %s9, 0
    %p50 = por %p48, %p49
    %p51 = scmp.ne.s32.totalorder %s43, %s45
    %p52 = scmp.eq.s32.totalorder %s14, 1
    %p53 = por %p51, %p52
    %p54 = scmp.ne.s32.totalorder %s45, %s46
    %p55 = scmp.eq.s32.totalorder %s14, 0
    %p56 = por %p54, %p55
    %p57 = scmp.ne.s32.totalorder %s45, %s46
    %p58 = scmp.eq.s32.totalorder %s15, 1
    %p59 = por %p57, %p58
    %p61 = scmp.ne.s32.totalorder %s46, %s60
    %p62 = scmp.eq.s32.totalorder %s15, 0
    %p63 = por %p61, %p62
    %s65 = sadd.s32 %s64, 1
    %p68 = scmp.eq.s32.totalorder %s9, 1
    %p69 = scmp.ne.s32.totalorder %s64, %s66
    %p70 = scmp.eq.s32.totalorder %s9, 0
    %p71 = por %p69, %p70
    %p72 = scmp.ne.s32.totalorder %s64, %s66
    %p73 = scmp.eq.s32.totalorder %s14, 1
    %p74 = por %p72, %p73
    %p75 = scmp.ne.s32.totalorder %s66, %s67
    %p76 = scmp.eq.s32.totalorder %s14, 0
    %p77 = por %p75, %p76
    %p78 = scmp.ne.s32.totalorder %s66, %s67
    %p79 = scmp.eq.s32.totalorder %s15, 1
    %p80 = por %p78, %p79
    %p82 = scmp.ne.s32.totalorder %s67, %s81
    %p83 = scmp.eq.s32.totalorder %s15, 0
    %p84 = por %p82, %p83
    %s85 = ssub.s32 %s9, %s16
    %p86 = scmp.eq.s32.totalorder %s85, 0
    %s88 = sadd.s32 %s87, 1
    %s89 = scalar_select %p86, %s87, %s88
    %p92 = pneg %p86
    %p93 = scmp.eq.s32.totalorder %s9, 1
    %p94 = por %p92, %p93
    %p95 = scmp.ne.s32.totalorder %s87, %s90
    %p96 = scmp.eq.s32.totalorder %s9, 0
    %p97 = por %p95, %p96
    %p98 = scmp.ne.s32.totalorder %s87, %s90
    %p99 = scmp.eq.s32.totalorder %s14, 1
    %p100 = por %p98, %p99
    %p101 = scmp.ne.s32.totalorder %s90, %s91
    %p102 = scmp.eq.s32.totalorder %s14, 0
    %p103 = por %p101, %p102
    %p104 = scmp.ne.s32.totalorder %s90, %s91
    %p105 = scmp.eq.s32.totalorder %s15, 1
    %p106 = por %p104, %p105
    %p108 = scmp.ne.s32.totalorder %s91, %s107
    %p109 = scmp.eq.s32.totalorder %s15, 0
    %p110 = por %p108, %p109
    %p111 = scmp.le.s32.totalorder 1, %s9
    %p112 = scmp.lt.s32.totalorder %s9, 3
    %p113 = pnand %p111, %p112
    %p114 = pneg %p113
    // Predicated region
    $region9: #{_lambda_.4} parent=5 // pred_check
      _
    $region10: #{_lambda_.4} parent=5 // pred_check_branch
      %116 = sbr.rel (%p113) target = $region12
    $region11: #{_lambda_.4} parent=5 // pred_region
      %s117 = ssub.s32 %s9, 1
      // Predicated region
      $region13: #{_lambda_.4} parent=11 // pred_check
        %p118 = pneg %p56
      $region14: #{_lambda_.4} parent=11 // pred_check_branch
        %120 = sbr.rel (%p118) target = $region16
      $region15: #{_lambda_.4} parent=11 // pred_region
        _
      $region16: #{_lambda_.4} parent=11 // pred_fallthru
        _
      // Predicated region
      $region17: #{_lambda_.4} parent=11 // pred_check
        %p121 = pneg %p77
      $region18: #{_lambda_.4} parent=11 // pred_check_branch
        %123 = sbr.rel (%p121) target = $region20
      $region19: #{_lambda_.4} parent=11 // pred_region
        _
      $region20: #{_lambda_.4} parent=11 // pred_fallthru
        _
    $region12: #{_lambda_.4} parent=5 // pred_fallthru
      _
    %p124 = scmp.lt.s32.totalorder %s9, 2
    // Predicated region
    $region21: #{_lambda_.4} parent=5 // pred_check
      %p125 = pneg %p124
    $region22: #{_lambda_.4} parent=5 // pred_check_branch
      %127 = sbr.rel (%p125) target = $region24
    $region23: #{_lambda_.4} parent=5 // pred_region
      // Predicated region
      $region25: #{_lambda_.4} parent=23 // pred_check
        %p128 = pneg %p29
      $region26: #{_lambda_.4} parent=23 // pred_check_branch
        %130 = sbr.rel (%p128) target = $region28
      $region27: #{_lambda_.4} parent=23 // pred_region
        %s131 = smul.u32 4, %s9
        %p132 = scmp.lt.s32.totalorder %s131, 7
        %s133 = scalar_select %p132, %s131, 7
        %s134 = smul.addr %s133, 8
        %s135 = smul.addr %s134, 4
        %s136 = scalar_lea.vmem %s0, %s135
        %s137 = smul.u32 4, %s9
      $region28: #{_lambda_.4} parent=23 // pred_fallthru
        _
    $region24: #{_lambda_.4} parent=5 // pred_fallthru
      _
    %p138 = scmp.le.s32.totalorder 1, %s9
    %p139 = scmp.lt.s32.totalorder %s9, 3
    %p140 = pnand %p138, %p139
    %p141 = pneg %p140
    // Predicated region
    $region29: #{_lambda_.4} parent=5 // pred_check
      _
    $region30: #{_lambda_.4} parent=5 // pred_check_branch
      %143 = sbr.rel (%p140) target = $region32
    $region31: #{_lambda_.4} parent=5 // pred_region
      %s144 = ssub.s32 %s9, 1
      %s145 = smul.u32 4, %s14
      %p146 = scmp.lt.s32.totalorder %s145, 7
      %s147 = scalar_select %p146, %s145, 7
      %s148 = smul.addr %s147, 8
      %s149 = smul.addr %s148, 4
      %s150 = scalar_lea.vmem %s0, %s149
      %p151 = pneg %p35
      %p152 = pneg %p32
      %p153 = pneg %p56
      %p154 = pneg %p53
      %p155 = pneg %p77
      %p156 = pneg %p74
      %p157 = pneg %p103
      %p158 = pneg %p100
      %s159 = smul.u32 4, %s14
      %p160 = scmp.lt.s32.totalorder %s159, 7
      %s161 = scalar_select %p160, %s159, 7
      %s162 = smul.addr %s161, 4
      %s163 = scalar_lea.vmem %s3, %s162
      %s164 = smul.u32 4, %s14
      %p165 = scmp.lt.s32.totalorder %s164, 7
      %s166 = scalar_select %p165, %s164, 7
      %s167 = smul.addr %s166, 8
      %s168 = smul.addr %s167, 4
      %s169 = scalar_lea.vmem %s0, %s168
      %s170 = smul.u32 4, %s14
      %s171 = smul.u32 4, %s14
      %p172 = scmp.lt.s32.totalorder %s171, 7
      %s173 = scalar_select %p172, %s171, 7
      %s174 = smul.addr %s173, 4
      %s175 = scalar_lea.vmem %s3, %s174
      %s176 = smul.u32 4, %s14
      %v178 = vld [vmem:[%s169] sm:$0xff]
      %v179 = vld [vmem:[%s169 + $0x8] sm:$0xff]
      %v180 = vld [vmem:[%s169 + $0x10] sm:$0xff]
      %v181 = vld [vmem:[%s169 + $0x18] sm:$0xff]
      %v182 = vld [vmem:[%s169 + $0x20] sm:$0xff]
      %v183 = vld [vmem:[%s169 + $0x28] sm:$0xff]
      %v184 = vld [vmem:[%s169 + $0x30] sm:$0xff]
      %v185 = vld [vmem:[%s169 + $0x38] sm:$0xff]
      %v186 = vld [vmem:[%s169 + $0x40] sm:$0xff]
      %v187 = vld [vmem:[%s169 + $0x48] sm:$0xff]
      %v188 = vld [vmem:[%s169 + $0x50] sm:$0xff]
      %v189 = vld [vmem:[%s169 + $0x58] sm:$0xff]
      %v190 = vld [vmem:[%s169 + $0x60] sm:$0xff]
      %v191 = vld [vmem:[%s169 + $0x68] sm:$0xff]
      %v192 = vld [vmem:[%s169 + $0x70] sm:$0xff]
      %v193 = vld [vmem:[%s169 + $0x78] sm:$0xff]
      %v198 = vunpack.c.l.b16 %v178
      %v199 = vunpack.c.h.b16 %v178
      %v200 = vunpack.c.l.b16 %v182
      %v201 = vunpack.c.h.b16 %v182
      %v202 = vunpack.c.l.b16 %v186
      %v203 = vunpack.c.h.b16 %v186
      %v204 = vunpack.c.l.b16 %v190
      %v205 = vunpack.c.h.b16 %v190
      %v206 = vpack.c.b16 %v200, %v198
      %v207 = vpack.c.b16 %v201, %v199
      %v208 = vpack.c.b16 %v204, %v202
      %v209 = vpack.c.b16 %v205, %v203
      %v218 = vunpack.c.l.b16 %v179
      %v219 = vunpack.c.h.b16 %v179
      %v220 = vunpack.c.l.b16 %v183
      %v221 = vunpack.c.h.b16 %v183
      %v222 = vunpack.c.l.b16 %v187
      %v223 = vunpack.c.h.b16 %v187
      %v224 = vunpack.c.l.b16 %v191
      %v225 = vunpack.c.h.b16 %v191
      %v226 = vpack.c.b16 %v220, %v218
      %v227 = vpack.c.b16 %v221, %v219
      %v228 = vpack.c.b16 %v224, %v222
      %v229 = vpack.c.b16 %v225, %v223
      %v238 = vunpack.c.l.b16 %v180
      %v239 = vunpack.c.h.b16 %v180
      %v240 = vunpack.c.l.b16 %v184
      %v241 = vunpack.c.h.b16 %v184
      %v242 = vunpack.c.l.b16 %v188
      %v243 = vunpack.c.h.b16 %v188
      %v244 = vunpack.c.l.b16 %v192
      %v245 = vunpack.c.h.b16 %v192
      %v246 = vpack.c.b16 %v240, %v238
      %v247 = vpack.c.b16 %v241, %v239
      %v248 = vpack.c.b16 %v244, %v242
      %v249 = vpack.c.b16 %v245, %v243
      %v258 = vunpack.c.l.b16 %v181
      %v259 = vunpack.c.h.b16 %v181
      %v260 = vunpack.c.l.b16 %v185
      %v261 = vunpack.c.h.b16 %v185
      %v262 = vunpack.c.l.b16 %v189
      %v263 = vunpack.c.h.b16 %v189
      %v264 = vunpack.c.l.b16 %v193
      %v265 = vunpack.c.h.b16 %v193
      %v266 = vpack.c.b16 %v260, %v258
      %v267 = vpack.c.b16 %v261, %v259
      %v268 = vpack.c.b16 %v264, %v262
      %v269 = vpack.c.b16 %v265, %v263
      %v274 = vld [vmem:[%s1] sm:$0xf]
      %v275 = vld [vmem:[%s1 + $0x4] sm:$0xf]
      %v276 = vld [vmem:[%s1 + $0x8] sm:$0xf]
      %v277 = vld [vmem:[%s1 + $0xc] sm:$0xf]
      %v278 = vld [vmem:[%s1 + $0x10] sm:$0xf]
      %v279 = vld [vmem:[%s1 + $0x14] sm:$0xf]
      %v280 = vld [vmem:[%s1 + $0x18] sm:$0xf]
      %v281 = vld [vmem:[%s1 + $0x1c] sm:$0xf]
      %v282 = vld [vmem:[%s1 + $0x20] sm:$0xf]
      %v283 = vld [vmem:[%s1 + $0x24] sm:$0xf]
      %v284 = vld [vmem:[%s1 + $0x28] sm:$0xf]
      %v285 = vld [vmem:[%s1 + $0x2c] sm:$0xf]
      %v286 = vld [vmem:[%s1 + $0x30] sm:$0xf]
      %v287 = vld [vmem:[%s1 + $0x34] sm:$0xf]
      %v288 = vld [vmem:[%s1 + $0x38] sm:$0xf]
      %v289 = vld [vmem:[%s1 + $0x3c] sm:$0xf]
      %v290 = vld [vmem:[%s1 + $0x40] sm:$0xf]
      %v291 = vld [vmem:[%s1 + $0x44] sm:$0xf]
      %v292 = vld [vmem:[%s1 + $0x48] sm:$0xf]
      %v293 = vld [vmem:[%s1 + $0x4c] sm:$0xf]
      %v294 = vld [vmem:[%s1 + $0x50] sm:$0xf]
      %v295 = vld [vmem:[%s1 + $0x54] sm:$0xf]
      %v296 = vld [vmem:[%s1 + $0x58] sm:$0xf]
      %v297 = vld [vmem:[%s1 + $0x5c] sm:$0xf]
      %v298 = vld [vmem:[%s1 + $0x60] sm:$0xf]
      %v299 = vld [vmem:[%s1 + $0x64] sm:$0xf]
      %v300 = vld [vmem:[%s1 + $0x68] sm:$0xf]
      %v301 = vld [vmem:[%s1 + $0x6c] sm:$0xf]
      %v302 = vld [vmem:[%s1 + $0x70] sm:$0xf]
      %v303 = vld [vmem:[%s1 + $0x74] sm:$0xf]
      %v304 = vld [vmem:[%s1 + $0x78] sm:$0xf]
      %v305 = vld [vmem:[%s1 + $0x7c] sm:$0xf]
      %v338 = vunpack.c.l.b16 %v274
      %v339 = vunpack.c.l.b16 %v275
      %v340 = vunpack.c.l.b16 %v276
      %v341 = vunpack.c.l.b16 %v277
      %v342 = vunpack.c.l.b16 %v278
      %v343 = vunpack.c.l.b16 %v279
      %v344 = vunpack.c.l.b16 %v280
      %v345 = vunpack.c.l.b16 %v281
      %v346 = vunpack.c.l.b16 %v282
      %v347 = vunpack.c.l.b16 %v283
      %v348 = vunpack.c.l.b16 %v284
      %v349 = vunpack.c.l.b16 %v285
      %v350 = vunpack.c.l.b16 %v286
      %v351 = vunpack.c.l.b16 %v287
      %v352 = vunpack.c.l.b16 %v288
      %v353 = vunpack.c.l.b16 %v289
      %v354 = vunpack.c.l.b16 %v290
      %v355 = vunpack.c.l.b16 %v291
      %v356 = vunpack.c.l.b16 %v292
      %v357 = vunpack.c.l.b16 %v293
      %v358 = vunpack.c.l.b16 %v294
      %v359 = vunpack.c.l.b16 %v295
      %v360 = vunpack.c.l.b16 %v296
      %v361 = vunpack.c.l.b16 %v297
      %v362 = vunpack.c.l.b16 %v298
      %v363 = vunpack.c.l.b16 %v299
      %v364 = vunpack.c.l.b16 %v300
      %v365 = vunpack.c.l.b16 %v301
      %v366 = vunpack.c.l.b16 %v302
      %v367 = vunpack.c.l.b16 %v303
      %v368 = vunpack.c.l.b16 %v304
      %v369 = vunpack.c.l.b16 %v305
      %v370 = vpack.c.b16 %v339, %v338
      %v371 = vpack.c.b16 %v341, %v340
      %v372 = vpack.c.b16 %v343, %v342
      %v373 = vpack.c.b16 %v345, %v344
      %v374 = vpack.c.b16 %v347, %v346
      %v375 = vpack.c.b16 %v349, %v348
      %v376 = vpack.c.b16 %v351, %v350
      %v377 = vpack.c.b16 %v353, %v352
      %v378 = vpack.c.b16 %v355, %v354
      %v379 = vpack.c.b16 %v357, %v356
      %v380 = vpack.c.b16 %v359, %v358
      %v381 = vpack.c.b16 %v361, %v360
      %v382 = vpack.c.b16 %v363, %v362
      %v383 = vpack.c.b16 %v365, %v364
      %v384 = vpack.c.b16 %v367, %v366
      %v385 = vpack.c.b16 %v369, %v368
      %402 = vmatprep.subr.bf16.mxu0 0
      %403 = vmatpush1.bf16.msra.mxu0 %v377
      %404 = vmatprep.subr.bf16.mxu0 0
      %405 = vmatpush1.bf16.msra.mxu0 %v376
      %406 = vmatprep.subr.bf16.mxu0 0
      %407 = vmatpush1.bf16.msra.mxu0 %v375
      %408 = vmatprep.subr.bf16.mxu0 0
      %409 = vmatpush1.bf16.msra.mxu0 %v374
      %410 = vmatprep.subr.bf16.mxu0 0
      %411 = vmatpush1.bf16.msra.mxu0 %v373
      %412 = vmatprep.subr.bf16.mxu0 0
      %413 = vmatpush1.bf16.msra.mxu0 %v372
      %414 = vmatprep.subr.bf16.mxu0 0
      %415 = vmatpush1.bf16.msra.mxu0 %v371
      %416 = vmatprep.subr.bf16.mxu0 0
      %417 = vmatpush1.bf16.msra.mxu0 %v370
      %418 = vmatprep.subr.bf16.mxu0 0
      %419 = vmatpush2.bf16.msra.mxu0 %v385
      %420 = vmatprep.subr.bf16.mxu0 0
      %421 = vmatpush2.bf16.msra.mxu0 %v384
      %422 = vmatprep.subr.bf16.mxu0 0
      %423 = vmatpush2.bf16.msra.mxu0 %v383
      %424 = vmatprep.subr.bf16.mxu0 0
      %425 = vmatpush2.bf16.msra.mxu0 %v382
      %426 = vmatprep.subr.bf16.mxu0 0
      %427 = vmatpush2.bf16.msra.mxu0 %v381
      %428 = vmatprep.subr.bf16.mxu0 0
      %429 = vmatpush2.bf16.msra.mxu0 %v380
      %430 = vmatprep.subr.bf16.mxu0 0
      %431 = vmatpush2.bf16.msra.mxu0 %v379
      %432 = vmatprep.subr.bf16.mxu0 0
      %433 = vmatpush2.bf16.msra.mxu0 %v378
      %434 = vmatprep.mubr.bf16.mxu0 %v207
      %435 = vmatmul.mubr.bf16.gmra.mxu0 %v206
      %v436 = vpop.f32.mrf.mxu0
      %v437 = vadd.f32 0.0, %v436
      %v438 = vpop.f32.mrf.mxu0
      %v439 = vpop.f32.mrf.mxu0
      %v440 = vadd.f32 0.0, %v439
      %v441 = vpop.f32.mrf.mxu0
      %442 = vmatprep.mubr.bf16.mxu0 %v209
      %443 = vmatmul.mubr.bf16.gmra.mxu0 %v208
      %v444 = vpop.f32.mrf.mxu0
      %v445 = vadd.f32 0.0, %v444
      %v446 = vpop.f32.mrf.mxu0
      %v447 = vpop.f32.mrf.mxu0
      %v448 = vadd.f32 0.0, %v447
      %v449 = vpop.f32.mrf.mxu0
      %450 = vmatprep.mubr.bf16.mxu0 %v227
      %451 = vmatmul.mubr.bf16.gmra.mxu0 %v226
      %v452 = vpop.f32.mrf.mxu0
      %v453 = vadd.f32 0.0, %v452
      %v454 = vpop.f32.mrf.mxu0
      %v455 = vpop.f32.mrf.mxu0
      %v456 = vadd.f32 0.0, %v455
      %v457 = vpop.f32.mrf.mxu0
      %458 = vmatprep.mubr.bf16.mxu0 %v229
      %459 = vmatmul.mubr.bf16.gmra.mxu0 %v228
      %v460 = vpop.f32.mrf.mxu0
      %v461 = vadd.f32 0.0, %v460
      %v462 = vpop.f32.mrf.mxu0
      %v463 = vpop.f32.mrf.mxu0
      %v464 = vadd.f32 0.0, %v463
      %v465 = vpop.f32.mrf.mxu0
      %466 = vmatprep.mubr.bf16.mxu0 %v247
      %467 = vmatmul.mubr.bf16.gmra.mxu0 %v246
      %v468 = vpop.f32.mrf.mxu0
      %v469 = vadd.f32 0.0, %v468
      %v470 = vpop.f32.mrf.mxu0
      %v471 = vpop.f32.mrf.mxu0
      %v472 = vadd.f32 0.0, %v471
      %v473 = vpop.f32.mrf.mxu0
      %474 = vmatprep.mubr.bf16.mxu0 %v249
      %475 = vmatmul.mubr.bf16.gmra.mxu0 %v248
      %v476 = vpop.f32.mrf.mxu0
      %v477 = vadd.f32 0.0, %v476
      %v478 = vpop.f32.mrf.mxu0
      %v479 = vpop.f32.mrf.mxu0
      %v480 = vadd.f32 0.0, %v479
      %v481 = vpop.f32.mrf.mxu0
      %482 = vmatprep.mubr.bf16.mxu0 %v267
      %483 = vmatmul.mubr.bf16.gmra.mxu0 %v266
      %v484 = vpop.f32.mrf.mxu0
      %v485 = vadd.f32 0.0, %v484
      %v486 = vpop.f32.mrf.mxu0
      %v487 = vpop.f32.mrf.mxu0
      %v488 = vadd.f32 0.0, %v487
      %v489 = vpop.f32.mrf.mxu0
      %490 = vmatprep.mubr.bf16.mxu0 %v269
      %491 = vmatmul.mubr.bf16.gmra.mxu0 %v268
      %v492 = vpop.f32.mrf.mxu0
      %v493 = vadd.f32 0.0, %v492
      %v494 = vpop.f32.mrf.mxu0
      %v495 = vpop.f32.mrf.mxu0
      %v496 = vadd.f32 0.0, %v495
      %v497 = vpop.f32.mrf.mxu0
      %498 = vdwg.mxu0
      %v499 = vmax.f32 %v437, %v453
      %v500 = vmax.f32 %v440, %v456
      %v501 = vmax.f32 %v445, %v461
      %v502 = vmax.f32 %v448, %v464
      %v503 = vmax.f32 %v469, %v485
      %v504 = vmax.f32 %v472, %v488
      %v505 = vmax.f32 %v477, %v493
      %v506 = vmax.f32 %v480, %v496
      %v507 = vmax.f32 %v499, %v503
      %v508 = vmax.f32 %v500, %v504
      %v509 = vmax.f32 %v501, %v505
      %v510 = vmax.f32 %v502, %v506
      %v511 = vld [vmem:[%s2] sm:$0x1]
      %v513 = vlaneseq
      %v514 = vshrl.u32 %v513, 7
      %v515 = vsub.s32 0, %v514
      %v516 = vrot.slane %v511, %v515
      %v518 = vadd.f32 %v507, %v516
      %v519 = vadd.f32 %v508, %v516
      %v520 = vadd.f32 %v509, %v516
      %v521 = vadd.f32 %v510, %v516
      %v522 = vmax.f32 %v518, 0.0
      %v523 = vmax.f32 %v519, 0.0
      %v524 = vmax.f32 %v520, 0.0
      %v525 = vmax.f32 %v521, 0.0
      %v526 = vpack.c.bf16 %v523, %v522
      %v527 = vpack.c.bf16 %v525, %v524
      %v530 = vunpack.c.l.b16 %v526
      %v531 = vunpack.c.h.b16 %v526
      %v532 = vunpack.c.l.b16 %v527
      %v533 = vunpack.c.h.b16 %v527
      %v534 = vpack.c.b16 %v530, %v530
      %v535 = vpack.c.b16 %v531, %v531
      %v536 = vpack.c.b16 %v532, %v532
      %v537 = vpack.c.b16 %v533, %v533
      %542 = vst [vmem:[%s175] sm:$0xf] %v534
      %543 = vst [vmem:[%s175 + $0x4] sm:$0xf] %v535
      %544 = vst [vmem:[%s175 + $0x8] sm:$0xf] %v536
      %545 = vst [vmem:[%s175 + $0xc] sm:$0xf] %v537
      %s546 = smul.u32 4, %s14
      %p547 = scmp.lt.s32.totalorder %s546, 7
      %s548 = scalar_select %p547, %s546, 7
      %s549 = smul.addr %s548, 4
      %s550 = scalar_lea.vmem %s3, %s549
      // Predicated region
      $region33: #{_lambda_.4} parent=31 // pred_check
        %p551 = pneg %p100
      $region34: #{_lambda_.4} parent=31 // pred_check_branch
        %553 = sbr.rel (%p551) target = $region36
      $region35: #{_lambda_.4} parent=31 // pred_region
        %s554 = smul.u32 4, %s14
      $region36: #{_lambda_.4} parent=31 // pred_fallthru
        _
    $region32: #{_lambda_.4} parent=5 // pred_fallthru
      _
    %p555 = scmp.le.s32.totalorder 2, %s9
    // Predicated region
    $region37: #{_lambda_.4} parent=5 // pred_check
      %p556 = pneg %p555
    $region38: #{_lambda_.4} parent=5 // pred_check_branch
      %558 = sbr.rel (%p556) target = $region40
    $region39: #{_lambda_.4} parent=5 // pred_region
      %s559 = ssub.s32 %s9, 2
      // Predicated region
      $region41: #{_lambda_.4} parent=39 // pred_check
        %p560 = pneg %p106
      $region42: #{_lambda_.4} parent=39 // pred_check_branch
        %562 = sbr.rel (%p560) target = $region44
      $region43: #{_lambda_.4} parent=39 // pred_region
        %s563 = smul.u32 4, %s15
        %p564 = scmp.lt.s32.totalorder %s563, 7
        %s565 = scalar_select %p564, %s563, 7
        %s566 = smul.addr %s565, 4
        %s567 = scalar_lea.vmem %s3, %s566
      $region44: #{_lambda_.4} parent=39 // pred_fallthru
        _
    $region40: #{_lambda_.4} parent=5 // pred_fallthru
      _
  $region6: #{_lambda_.4} parent=0 // loop_footer
    %s13 = sadd.s32 1, %s9
  $region7: #{_lambda_.4} parent=0 // loop_footer_branch
    %8 = sbr.rel target = $region3
  $region8: #{_lambda_.4} parent=0 // loop_exit
    _

// kernel: _lambda_.5
$region0: #{_lambda_.5}
  #allocation0 [shape = 'u32[]', space=smem, size = 0x4, offset = 0x4, fixed_abs, tag = 'smem constant byte address 0x4 - core index']
  #allocation1 [shape = 'u32[144,128]{1,0:T(1,128)}', space=vmem, size = 0x12000, scoped, tag = 'internal scratch']
  %s0 = inlined_call_operand.vmem [shape: bf16[16,512], index: 0, kind: input, shape index: {}]
  %s1 = inlined_call_operand.vmem [shape: bf16[512,128], index: 1, kind: input, shape index: {}]
  %s2 = inlined_call_operand.vmem [shape: f32[1,128], index: 2, kind: input, shape index: {}]
  %s3 = inlined_call_operand.vmem [shape: bf16[128,128], index: 3, kind: input, shape index: {}]
  %s4 = inlined_call_operand.vmem [shape: f32[1,128], index: 4, kind: input, shape index: {}]
  %s5 = inlined_call_operand.vmem [shape: bf16[128,128], index: 5, kind: input, shape index: {}]
  %s6 = inlined_call_operand.vmem [shape: f32[1,128], index: 6, kind: input, shape index: {}]
  %s7 = inlined_call_operand.vmem [shape: f32[16,128], index: 7, kind: output, shape index: {}]
  %s8 = sld [smem:[#allocation0]]
  $region38: #{_lambda_.5} parent=0
    _
  %s10 = ssub.s32 1, %s8
  %s11 = scalar_select 0, %s10, %s8
  // Predicated region
  $region2: #{_lambda_.5} parent=0 // pred_check
    _
  $region3: #{_lambda_.5} parent=0 // pred_check_branch
    %13 = sbr.rel (0) target = $region5
  $region4: #{_lambda_.5} parent=0 // pred_region
    _
  $region5: #{_lambda_.5} parent=0 // pred_fallthru
    _
  // Predicated region
  $region6: #{_lambda_.5} parent=0 // pred_check
    _
  $region7: #{_lambda_.5} parent=0 // pred_check_branch
    %15 = sbr.rel (0) target = $region9
  $region8: #{_lambda_.5} parent=0 // pred_region
    _
  $region9: #{_lambda_.5} parent=0 // pred_fallthru
    _
  // Predicated region
  $region10: #{_lambda_.5} parent=0 // pred_check
    _
  $region11: #{_lambda_.5} parent=0 // pred_check_branch
    %17 = sbr.rel (0) target = $region13
  $region12: #{_lambda_.5} parent=0 // pred_region
    _
  $region13: #{_lambda_.5} parent=0 // pred_fallthru
    _
  // Predicated region
  $region14: #{_lambda_.5} parent=0 // pred_check
    _
  $region15: #{_lambda_.5} parent=0 // pred_check_branch
    %19 = sbr.rel (0) target = $region17
  $region16: #{_lambda_.5} parent=0 // pred_region
    _
  $region17: #{_lambda_.5} parent=0 // pred_fallthru
    _
  // Predicated region
  $region18: #{_lambda_.5} parent=0 // pred_check
    _
  $region19: #{_lambda_.5} parent=0 // pred_check_branch
    %21 = sbr.rel (0) target = $region21
  $region20: #{_lambda_.5} parent=0 // pred_region
    _
  $region21: #{_lambda_.5} parent=0 // pred_fallthru
    _
  // Predicated region
  $region22: #{_lambda_.5} parent=0 // pred_check
    _
  $region23: #{_lambda_.5} parent=0 // pred_check_branch
    %23 = sbr.rel (0) target = $region25
  $region24: #{_lambda_.5} parent=0 // pred_region
    _
  $region25: #{_lambda_.5} parent=0 // pred_fallthru
    _
  // Predicated region
  $region26: #{_lambda_.5} parent=0 // pred_check
    _
  $region27: #{_lambda_.5} parent=0 // pred_check_branch
    %25 = sbr.rel (0) target = $region29
  $region28: #{_lambda_.5} parent=0 // pred_region
    _
  $region29: #{_lambda_.5} parent=0 // pred_fallthru
    _
  %v27 = vld [vmem:[%s0] sm:$0xff]
  %v28 = vld [vmem:[%s0 + $0x8] sm:$0xff]
  %v29 = vld [vmem:[%s0 + $0x10] sm:$0xff]
  %v30 = vld [vmem:[%s0 + $0x18] sm:$0xff]
  %v31 = vld [vmem:[%s1] sm:$0xf]
  %v32 = vld [vmem:[%s1 + $0x4] sm:$0xf]
  %v33 = vld [vmem:[%s1 + $0x8] sm:$0xf]
  %v34 = vld [vmem:[%s1 + $0xc] sm:$0xf]
  %v35 = vld [vmem:[%s1 + $0x10] sm:$0xf]
  %v36 = vld [vmem:[%s1 + $0x14] sm:$0xf]
  %v37 = vld [vmem:[%s1 + $0x18] sm:$0xf]
  %v38 = vld [vmem:[%s1 + $0x1c] sm:$0xf]
  %v39 = vld [vmem:[%s1 + $0x20] sm:$0xf]
  %v40 = vld [vmem:[%s1 + $0x24] sm:$0xf]
  %v41 = vld [vmem:[%s1 + $0x28] sm:$0xf]
  %v42 = vld [vmem:[%s1 + $0x2c] sm:$0xf]
  %v43 = vld [vmem:[%s1 + $0x30] sm:$0xf]
  %v44 = vld [vmem:[%s1 + $0x34] sm:$0xf]
  %v45 = vld [vmem:[%s1 + $0x38] sm:$0xf]
  %v46 = vld [vmem:[%s1 + $0x3c] sm:$0xf]
  %v47 = vld [vmem:[%s1 + $0x40] sm:$0xf]
  %v48 = vld [vmem:[%s1 + $0x44] sm:$0xf]
  %v49 = vld [vmem:[%s1 + $0x48] sm:$0xf]
  %v50 = vld [vmem:[%s1 + $0x4c] sm:$0xf]
  %v51 = vld [vmem:[%s1 + $0x50] sm:$0xf]
  %v52 = vld [vmem:[%s1 + $0x54] sm:$0xf]
  %v53 = vld [vmem:[%s1 + $0x58] sm:$0xf]
  %v54 = vld [vmem:[%s1 + $0x5c] sm:$0xf]
  %v55 = vld [vmem:[%s1 + $0x60] sm:$0xf]
  %v56 = vld [vmem:[%s1 + $0x64] sm:$0xf]
  %v57 = vld [vmem:[%s1 + $0x68] sm:$0xf]
  %v58 = vld [vmem:[%s1 + $0x6c] sm:$0xf]
  %v59 = vld [vmem:[%s1 + $0x70] sm:$0xf]
  %v60 = vld [vmem:[%s1 + $0x74] sm:$0xf]
  %v61 = vld [vmem:[%s1 + $0x78] sm:$0xf]
  %v62 = vld [vmem:[%s1 + $0x7c] sm:$0xf]
  %v63 = vld [vmem:[%s1 + $0x80] sm:$0xf]
  %v64 = vld [vmem:[%s1 + $0x84] sm:$0xf]
  %v65 = vld [vmem:[%s1 + $0x88] sm:$0xf]
  %v66 = vld [vmem:[%s1 + $0x8c] sm:$0xf]
  %v67 = vld [vmem:[%s1 + $0x90] sm:$0xf]
  %v68 = vld [vmem:[%s1 + $0x94] sm:$0xf]
  %v69 = vld [vmem:[%s1 + $0x98] sm:$0xf]
  %v70 = vld [vmem:[%s1 + $0x9c] sm:$0xf]
  %v71 = vld [vmem:[%s1 + $0xa0] sm:$0xf]
  %v72 = vld [vmem:[%s1 + $0xa4] sm:$0xf]
  %v73 = vld [vmem:[%s1 + $0xa8] sm:$0xf]
  %v74 = vld [vmem:[%s1 + $0xac] sm:$0xf]
  %v75 = vld [vmem:[%s1 + $0xb0] sm:$0xf]
  %v76 = vld [vmem:[%s1 + $0xb4] sm:$0xf]
  %v77 = vld [vmem:[%s1 + $0xb8] sm:$0xf]
  %v78 = vld [vmem:[%s1 + $0xbc] sm:$0xf]
  %v79 = vld [vmem:[%s1 + $0xc0] sm:$0xf]
  %v80 = vld [vmem:[%s1 + $0xc4] sm:$0xf]
  %v81 = vld [vmem:[%s1 + $0xc8] sm:$0xf]
  %v82 = vld [vmem:[%s1 + $0xcc] sm:$0xf]
  %v83 = vld [vmem:[%s1 + $0xd0] sm:$0xf]
  %v84 = vld [vmem:[%s1 + $0xd4] sm:$0xf]
  %v85 = vld [vmem:[%s1 + $0xd8] sm:$0xf]
  %v86 = vld [vmem:[%s1 + $0xdc] sm:$0xf]
  %v87 = vld [vmem:[%s1 + $0xe0] sm:$0xf]
  %v88 = vld [vmem:[%s1 + $0xe4] sm:$0xf]
  %v89 = vld [vmem:[%s1 + $0xe8] sm:$0xf]
  %v90 = vld [vmem:[%s1 + $0xec] sm:$0xf]
  %v91 = vld [vmem:[%s1 + $0xf0] sm:$0xf]
  %v92 = vld [vmem:[%s1 + $0xf4] sm:$0xf]
  %v93 = vld [vmem:[%s1 + $0xf8] sm:$0xf]
  %v94 = vld [vmem:[%s1 + $0xfc] sm:$0xf]
  %v95 = vld [vmem:[%s2] sm:$0x1]
  %v97 = vlaneseq
  %v98 = vshrl.u32 %v97, 7
  %v99 = vsub.s32 0, %v98
  %v100 = vrot.slane %v95, %v99
  %v106 = vunpack.c.l.b16 %v27
  %v107 = vunpack.c.h.b16 %v27
  %v108 = vunpack.c.l.b16 %v28
  %v109 = vunpack.c.h.b16 %v28
  %v110 = vunpack.c.l.b16 %v29
  %v111 = vunpack.c.h.b16 %v29
  %v112 = vunpack.c.l.b16 %v30
  %v113 = vunpack.c.h.b16 %v30
  %v114 = vpack.c.b16 %v110, %v106
  %v115 = vpack.c.b16 %v111, %v107
  %v116 = vpack.c.b16 %v112, %v108
  %v117 = vpack.c.b16 %v113, %v109
  %v186 = vunpack.c.l.b16 %v31
  %v187 = vunpack.c.l.b16 %v32
  %v188 = vunpack.c.l.b16 %v33
  %v189 = vunpack.c.l.b16 %v34
  %v190 = vunpack.c.l.b16 %v35
  %v191 = vunpack.c.l.b16 %v36
  %v192 = vunpack.c.l.b16 %v37
  %v193 = vunpack.c.l.b16 %v38
  %v194 = vunpack.c.l.b16 %v39
  %v195 = vunpack.c.l.b16 %v40
  %v196 = vunpack.c.l.b16 %v41
  %v197 = vunpack.c.l.b16 %v42
  %v198 = vunpack.c.l.b16 %v43
  %v199 = vunpack.c.l.b16 %v44
  %v200 = vunpack.c.l.b16 %v45
  %v201 = vunpack.c.l.b16 %v46
  %v202 = vunpack.c.l.b16 %v47
  %v203 = vunpack.c.l.b16 %v48
  %v204 = vunpack.c.l.b16 %v49
  %v205 = vunpack.c.l.b16 %v50
  %v206 = vunpack.c.l.b16 %v51
  %v207 = vunpack.c.l.b16 %v52
  %v208 = vunpack.c.l.b16 %v53
  %v209 = vunpack.c.l.b16 %v54
  %v210 = vunpack.c.l.b16 %v55
  %v211 = vunpack.c.l.b16 %v56
  %v212 = vunpack.c.l.b16 %v57
  %v213 = vunpack.c.l.b16 %v58
  %v214 = vunpack.c.l.b16 %v59
  %v215 = vunpack.c.l.b16 %v60
  %v216 = vunpack.c.l.b16 %v61
  %v217 = vunpack.c.l.b16 %v62
  %v218 = vunpack.c.l.b16 %v63
  %v219 = vunpack.c.l.b16 %v64
  %v220 = vunpack.c.l.b16 %v65
  %v221 = vunpack.c.l.b16 %v66
  %v222 = vunpack.c.l.b16 %v67
  %v223 = vunpack.c.l.b16 %v68
  %v224 = vunpack.c.l.b16 %v69
  %v225 = vunpack.c.l.b16 %v70
  %v226 = vunpack.c.l.b16 %v71
  %v227 = vunpack.c.l.b16 %v72
  %v228 = vunpack.c.l.b16 %v73
  %v229 = vunpack.c.l.b16 %v74
  %v230 = vunpack.c.l.b16 %v75
  %v231 = vunpack.c.l.b16 %v76
  %v232 = vunpack.c.l.b16 %v77
  %v233 = vunpack.c.l.b16 %v78
  %v234 = vunpack.c.l.b16 %v79
  %v235 = vunpack.c.l.b16 %v80
  %v236 = vunpack.c.l.b16 %v81
  %v237 = vunpack.c.l.b16 %v82
  %v238 = vunpack.c.l.b16 %v83
  %v239 = vunpack.c.l.b16 %v84
  %v240 = vunpack.c.l.b16 %v85
  %v241 = vunpack.c.l.b16 %v86
  %v242 = vunpack.c.l.b16 %v87
  %v243 = vunpack.c.l.b16 %v88
  %v244 = vunpack.c.l.b16 %v89
  %v245 = vunpack.c.l.b16 %v90
  %v246 = vunpack.c.l.b16 %v91
  %v247 = vunpack.c.l.b16 %v92
  %v248 = vunpack.c.l.b16 %v93
  %v249 = vunpack.c.l.b16 %v94
  %v250 = vpack.c.b16 %v187, %v186
  %v251 = vpack.c.b16 %v189, %v188
  %v252 = vpack.c.b16 %v191, %v190
  %v253 = vpack.c.b16 %v193, %v192
  %v254 = vpack.c.b16 %v195, %v194
  %v255 = vpack.c.b16 %v197, %v196
  %v256 = vpack.c.b16 %v199, %v198
  %v257 = vpack.c.b16 %v201, %v200
  %v258 = vpack.c.b16 %v203, %v202
  %v259 = vpack.c.b16 %v205, %v204
  %v260 = vpack.c.b16 %v207, %v206
  %v261 = vpack.c.b16 %v209, %v208
  %v262 = vpack.c.b16 %v211, %v210
  %v263 = vpack.c.b16 %v213, %v212
  %v264 = vpack.c.b16 %v215, %v214
  %v265 = vpack.c.b16 %v217, %v216
  %v266 = vpack.c.b16 %v219, %v218
  %v267 = vpack.c.b16 %v221, %v220
  %v268 = vpack.c.b16 %v223, %v222
  %v269 = vpack.c.b16 %v225, %v224
  %v270 = vpack.c.b16 %v227, %v226
  %v271 = vpack.c.b16 %v229, %v228
  %v272 = vpack.c.b16 %v231, %v230
  %v273 = vpack.c.b16 %v233, %v232
  %v274 = vpack.c.b16 %v235, %v234
  %v275 = vpack.c.b16 %v237, %v236
  %v276 = vpack.c.b16 %v239, %v238
  %v277 = vpack.c.b16 %v241, %v240
  %v278 = vpack.c.b16 %v243, %v242
  %v279 = vpack.c.b16 %v245, %v244
  %v280 = vpack.c.b16 %v247, %v246
  %v281 = vpack.c.b16 %v249, %v248
  %314 = vmatprep.subr.bf16.mxu0 0
  %315 = vmatpush1.bf16.msra.mxu0 %v257
  %316 = vmatprep.subr.bf16.mxu0 0
  %317 = vmatpush1.bf16.msra.mxu0 %v256
  %318 = vmatprep.subr.bf16.mxu0 0
  %319 = vmatpush1.bf16.msra.mxu0 %v255
  %320 = vmatprep.subr.bf16.mxu0 0
  %321 = vmatpush1.bf16.msra.mxu0 %v254
  %322 = vmatprep.subr.bf16.mxu0 0
  %323 = vmatpush1.bf16.msra.mxu0 %v253
  %324 = vmatprep.subr.bf16.mxu0 0
  %325 = vmatpush1.bf16.msra.mxu0 %v252
  %326 = vmatprep.subr.bf16.mxu0 0
  %327 = vmatpush1.bf16.msra.mxu0 %v251
  %328 = vmatprep.subr.bf16.mxu0 0
  %329 = vmatpush1.bf16.msra.mxu0 %v250
  %330 = vmatprep.subr.bf16.mxu0 0
  %331 = vmatpush2.bf16.msra.mxu0 %v265
  %332 = vmatprep.subr.bf16.mxu0 0
  %333 = vmatpush2.bf16.msra.mxu0 %v264
  %334 = vmatprep.subr.bf16.mxu0 0
  %335 = vmatpush2.bf16.msra.mxu0 %v263
  %336 = vmatprep.subr.bf16.mxu0 0
  %337 = vmatpush2.bf16.msra.mxu0 %v262
  %338 = vmatprep.subr.bf16.mxu0 0
  %339 = vmatpush2.bf16.msra.mxu0 %v261
  %340 = vmatprep.subr.bf16.mxu0 0
  %341 = vmatpush2.bf16.msra.mxu0 %v260
  %342 = vmatprep.subr.bf16.mxu0 0
  %343 = vmatpush2.bf16.msra.mxu0 %v259
  %344 = vmatprep.subr.bf16.mxu0 0
  %345 = vmatpush2.bf16.msra.mxu0 %v258
  %346 = vmatprep.mubr.bf16.mxu0 %v115
  %347 = vmatmul.mubr.bf16.gmra.mxu0 %v114
  %v348 = vpop.f32.mrf.mxu0
  %v349 = vadd.f32 %v100, %v348
  %v350 = vpop.f32.mrf.mxu0
  %v351 = vpop.f32.mrf.mxu0
  %v352 = vadd.f32 %v100, %v351
  %v353 = vpop.f32.mrf.mxu0
  %354 = vdwg.mxu0
  %355 = vmatprep.subr.bf16.mxu0 0
  %356 = vmatpush1.bf16.msra.mxu0 %v273
  %357 = vmatprep.subr.bf16.mxu0 0
  %358 = vmatpush1.bf16.msra.mxu0 %v272
  %359 = vmatprep.subr.bf16.mxu0 0
  %360 = vmatpush1.bf16.msra.mxu0 %v271
  %361 = vmatprep.subr.bf16.mxu0 0
  %362 = vmatpush1.bf16.msra.mxu0 %v270
  %363 = vmatprep.subr.bf16.mxu0 0
  %364 = vmatpush1.bf16.msra.mxu0 %v269
  %365 = vmatprep.subr.bf16.mxu0 0
  %366 = vmatpush1.bf16.msra.mxu0 %v268
  %367 = vmatprep.subr.bf16.mxu0 0
  %368 = vmatpush1.bf16.msra.mxu0 %v267
  %369 = vmatprep.subr.bf16.mxu0 0
  %370 = vmatpush1.bf16.msra.mxu0 %v266
  %371 = vmatprep.subr.bf16.mxu0 0
  %372 = vmatpush2.bf16.msra.mxu0 %v281
  %373 = vmatprep.subr.bf16.mxu0 0
  %374 = vmatpush2.bf16.msra.mxu0 %v280
  %375 = vmatprep.subr.bf16.mxu0 0
  %376 = vmatpush2.bf16.msra.mxu0 %v279
  %377 = vmatprep.subr.bf16.mxu0 0
  %378 = vmatpush2.bf16.msra.mxu0 %v278
  %379 = vmatprep.subr.bf16.mxu0 0
  %380 = vmatpush2.bf16.msra.mxu0 %v277
  %381 = vmatprep.subr.bf16.mxu0 0
  %382 = vmatpush2.bf16.msra.mxu0 %v276
  %383 = vmatprep.subr.bf16.mxu0 0
  %384 = vmatpush2.bf16.msra.mxu0 %v275
  %385 = vmatprep.subr.bf16.mxu0 0
  %386 = vmatpush2.bf16.msra.mxu0 %v274
  %387 = vmatprep.mubr.bf16.mxu0 %v117
  %388 = vmatmul.mubr.bf16.gmra.mxu0 %v116
  %v389 = vpop.f32.mrf.mxu0
  %v390 = vadd.f32 %v349, %v389
  %v391 = vpop.f32.mrf.mxu0
  %v392 = vpop.f32.mrf.mxu0
  %v393 = vadd.f32 %v352, %v392
  %v394 = vpop.f32.mrf.mxu0
  %395 = vdwg.mxu0
  %v396 = vmax.f32 %v390, 0.0
  %v397 = vmax.f32 %v393, 0.0
  %v398 = vpack.c.bf16 %v397, %v396
  %v399 = vld [vmem:[%s3] sm:$0xf]
  %v400 = vld [vmem:[%s3 + $0x4] sm:$0xf]
  %v401 = vld [vmem:[%s3 + $0x8] sm:$0xf]
  %v402 = vld [vmem:[%s3 + $0xc] sm:$0xf]
  %v403 = vld [vmem:[%s3 + $0x10] sm:$0xf]
  %v404 = vld [vmem:[%s3 + $0x14] sm:$0xf]
  %v405 = vld [vmem:[%s3 + $0x18] sm:$0xf]
  %v406 = vld [vmem:[%s3 + $0x1c] sm:$0xf]
  %v407 = vld [vmem:[%s3 + $0x20] sm:$0xf]
  %v408 = vld [vmem:[%s3 + $0x24] sm:$0xf]
  %v409 = vld [vmem:[%s3 + $0x28] sm:$0xf]
  %v410 = vld [vmem:[%s3 + $0x2c] sm:$0xf]
  %v411 = vld [vmem:[%s3 + $0x30] sm:$0xf]
  %v412 = vld [vmem:[%s3 + $0x34] sm:$0xf]
  %v413 = vld [vmem:[%s3 + $0x38] sm:$0xf]
  %v414 = vld [vmem:[%s3 + $0x3c] sm:$0xf]
  %v415 = vld [vmem:[%s4] sm:$0x1]
  %v417 = vlaneseq
  %v418 = vshrl.u32 %v417, 7
  %v419 = vsub.s32 0, %v418
  %v420 = vrot.slane %v415, %v419
  %v438 = vunpack.c.l.b16 %v399
  %v439 = vunpack.c.l.b16 %v400
  %v440 = vunpack.c.l.b16 %v401
  %v441 = vunpack.c.l.b16 %v402
  %v442 = vunpack.c.l.b16 %v403
  %v443 = vunpack.c.l.b16 %v404
  %v444 = vunpack.c.l.b16 %v405
  %v445 = vunpack.c.l.b16 %v406
  %v446 = vunpack.c.l.b16 %v407
  %v447 = vunpack.c.l.b16 %v408
  %v448 = vunpack.c.l.b16 %v409
  %v449 = vunpack.c.l.b16 %v410
  %v450 = vunpack.c.l.b16 %v411
  %v451 = vunpack.c.l.b16 %v412
  %v452 = vunpack.c.l.b16 %v413
  %v453 = vunpack.c.l.b16 %v414
  %v454 = vpack.c.b16 %v439, %v438
  %v455 = vpack.c.b16 %v441, %v440
  %v456 = vpack.c.b16 %v443, %v442
  %v457 = vpack.c.b16 %v445, %v444
  %v458 = vpack.c.b16 %v447, %v446
  %v459 = vpack.c.b16 %v449, %v448
  %v460 = vpack.c.b16 %v451, %v450
  %v461 = vpack.c.b16 %v453, %v452
  %470 = vmatprep.subr.bf16.mxu0 0
  %471 = vmatpush1.bf16.msra.mxu0 %v461
  %472 = vmatprep.subr.bf16.mxu0 0
  %473 = vmatpush1.bf16.msra.mxu0 %v460
  %474 = vmatprep.subr.bf16.mxu0 0
  %475 = vmatpush1.bf16.msra.mxu0 %v459
  %476 = vmatprep.subr.bf16.mxu0 0
  %477 = vmatpush1.bf16.msra.mxu0 %v458
  %478 = vmatprep.subr.bf16.mxu0 0
  %479 = vmatpush1.bf16.msra.mxu0 %v457
  %480 = vmatprep.subr.bf16.mxu0 0
  %481 = vmatpush1.bf16.msra.mxu0 %v456
  %482 = vmatprep.subr.bf16.mxu0 0
  %483 = vmatpush1.bf16.msra.mxu0 %v455
  %484 = vmatprep.subr.bf16.mxu0 0
  %485 = vmatpush1.bf16.msra.mxu0 %v454
  %486 = vmatprep.subr.bf16.mxu0 0
  %487 = vmatpush2.bf16.msra.mxu0 0
  %488 = vmatprep.subr.bf16.mxu0 0
  %489 = vmatpush2.bf16.msra.mxu0 0
  %490 = vmatprep.subr.bf16.mxu0 0
  %491 = vmatpush2.bf16.msra.mxu0 0
  %492 = vmatprep.subr.bf16.mxu0 0
  %493 = vmatpush2.bf16.msra.mxu0 0
  %494 = vmatprep.subr.bf16.mxu0 0
  %495 = vmatpush2.bf16.msra.mxu0 0
  %496 = vmatprep.subr.bf16.mxu0 0
  %497 = vmatpush2.bf16.msra.mxu0 0
  %498 = vmatprep.subr.bf16.mxu0 0
  %499 = vmatpush2.bf16.msra.mxu0 0
  %500 = vmatprep.subr.bf16.mxu0 0
  %501 = vmatpush2.bf16.msra.mxu0 0
  %502 = vmatprep.mubr.bf16.mxu0 0
  %503 = vmatmul.mubr.bf16.gmra.mxu0 %v398
  %v504 = vpop.f32.mrf.mxu0
  %v505 = vadd.f32 %v420, %v504
  %v506 = vpop.f32.mrf.mxu0
  %v507 = vpop.f32.mrf.mxu0
  %v508 = vadd.f32 %v420, %v507
  %v509 = vpop.f32.mrf.mxu0
  %510 = vdwg.mxu0
  %v511 = vmax.f32 %v505, 0.0
  %v512 = vmax.f32 %v508, 0.0
  %v513 = vpack.c.bf16 %v512, %v511
  %v514 = vld [vmem:[%s5] sm:$0xf]
  %v515 = vld [vmem:[%s5 + $0x4] sm:$0xf]
  %v516 = vld [vmem:[%s5 + $0x8] sm:$0xf]
  %v517 = vld [vmem:[%s5 + $0xc] sm:$0xf]
  %v518 = vld [vmem:[%s5 + $0x10] sm:$0xf]
  %v519 = vld [vmem:[%s5 + $0x14] sm:$0xf]
  %v520 = vld [vmem:[%s5 + $0x18] sm:$0xf]
  %v521 = vld [vmem:[%s5 + $0x1c] sm:$0xf]
  %v522 = vld [vmem:[%s5 + $0x20] sm:$0xf]
  %v523 = vld [vmem:[%s5 + $0x24] sm:$0xf]
  %v524 = vld [vmem:[%s5 + $0x28] sm:$0xf]
  %v525 = vld [vmem:[%s5 + $0x2c] sm:$0xf]
  %v526 = vld [vmem:[%s5 + $0x30] sm:$0xf]
  %v527 = vld [vmem:[%s5 + $0x34] sm:$0xf]
  %v528 = vld [vmem:[%s5 + $0x38] sm:$0xf]
  %v529 = vld [vmem:[%s5 + $0x3c] sm:$0xf]
  %v530 = vld [vmem:[%s6] sm:$0x1]
  %v532 = vlaneseq
  %v533 = vshrl.u32 %v532, 7
  %v534 = vsub.s32 0, %v533
  %v535 = vrot.slane %v530, %v534
  %v553 = vunpack.c.l.b16 %v514
  %v554 = vunpack.c.l.b16 %v515
  %v555 = vunpack.c.l.b16 %v516
  %v556 = vunpack.c.l.b16 %v517
  %v557 = vunpack.c.l.b16 %v518
  %v558 = vunpack.c.l.b16 %v519
  %v559 = vunpack.c.l.b16 %v520
  %v560 = vunpack.c.l.b16 %v521
  %v561 = vunpack.c.l.b16 %v522
  %v562 = vunpack.c.l.b16 %v523
  %v563 = vunpack.c.l.b16 %v524
  %v564 = vunpack.c.l.b16 %v525
  %v565 = vunpack.c.l.b16 %v526
  %v566 = vunpack.c.l.b16 %v527
  %v567 = vunpack.c.l.b16 %v528
  %v568 = vunpack.c.l.b16 %v529
  %v569 = vpack.c.b16 %v554, %v553
  %v570 = vpack.c.b16 %v556, %v555
  %v571 = vpack.c.b16 %v558, %v557
  %v572 = vpack.c.b16 %v560, %v559
  %v573 = vpack.c.b16 %v562, %v561
  %v574 = vpack.c.b16 %v564, %v563
  %v575 = vpack.c.b16 %v566, %v565
  %v576 = vpack.c.b16 %v568, %v567
  %585 = vmatprep.subr.bf16.mxu0 0
  %586 = vmatpush1.bf16.msra.mxu0 %v576
  %587 = vmatprep.subr.bf16.mxu0 0
  %588 = vmatpush1.bf16.msra.mxu0 %v575
  %589 = vmatprep.subr.bf16.mxu0 0
  %590 = vmatpush1.bf16.msra.mxu0 %v574
  %591 = vmatprep.subr.bf16.mxu0 0
  %592 = vmatpush1.bf16.msra.mxu0 %v573
  %593 = vmatprep.subr.bf16.mxu0 0
  %594 = vmatpush1.bf16.msra.mxu0 %v572
  %595 = vmatprep.subr.bf16.mxu0 0
  %596 = vmatpush1.bf16.msra.mxu0 %v571
  %597 = vmatprep.subr.bf16.mxu0 0
  %598 = vmatpush1.bf16.msra.mxu0 %v570
  %599 = vmatprep.subr.bf16.mxu0 0
  %600 = vmatpush1.bf16.msra.mxu0 %v569
  %601 = vmatprep.subr.bf16.mxu0 0
  %602 = vmatpush2.bf16.msra.mxu0 0
  %603 = vmatprep.subr.bf16.mxu0 0
  %604 = vmatpush2.bf16.msra.mxu0 0
  %605 = vmatprep.subr.bf16.mxu0 0
  %606 = vmatpush2.bf16.msra.mxu0 0
  %607 = vmatprep.subr.bf16.mxu0 0
  %608 = vmatpush2.bf16.msra.mxu0 0
  %609 = vmatprep.subr.bf16.mxu0 0
  %610 = vmatpush2.bf16.msra.mxu0 0
  %611 = vmatprep.subr.bf16.mxu0 0
  %612 = vmatpush2.bf16.msra.mxu0 0
  %613 = vmatprep.subr.bf16.mxu0 0
  %614 = vmatpush2.bf16.msra.mxu0 0
  %615 = vmatprep.subr.bf16.mxu0 0
  %616 = vmatpush2.bf16.msra.mxu0 0
  %617 = vmatprep.mubr.bf16.mxu0 0
  %618 = vmatmul.mubr.bf16.gmra.mxu0 %v513
  %v619 = vpop.f32.mrf.mxu0
  %v620 = vadd.f32 %v535, %v619
  %v621 = vpop.f32.mrf.mxu0
  %v622 = vpop.f32.mrf.mxu0
  %v623 = vadd.f32 %v535, %v622
  %v624 = vpop.f32.mrf.mxu0
  %625 = vdwg.mxu0
  %626 = vst [vmem:[%s7] sm:$0xff] %v620
  %627 = vst [vmem:[%s7 + $0x8] sm:$0xff] %v623
  // Predicated region
  $region30: #{_lambda_.5} parent=0 // pred_check
    _
  $region31: #{_lambda_.5} parent=0 // pred_check_branch
    %629 = sbr.rel (0) target = $region33
  $region32: #{_lambda_.5} parent=0 // pred_region
    _
  $region33: #{_lambda_.5} parent=0 // pred_fallthru
    _
  // Predicated region
  $region34: #{_lambda_.5} parent=0 // pred_check
    _
  $region35: #{_lambda_.5} parent=0 // pred_check_branch
    %631 = sbr.rel (0) target = $region37
  $region36: #{_lambda_.5} parent=0 // pred_region
    _
  $region37: #{_lambda_.5} parent=0 // pred_fallthru
    _

</llo_original>
